<compile_context>
chip_gen: v5e
topology: v5e:2x2
jax: 0.10.0
libtpu: 0.0.40
codegen_flags: <defaults>
</compile_context>

<pallas_src>
import jax
import jax.numpy as jnp
import numpy as np
from jax.experimental import pallas as pl
from jax.experimental.pallas import tpu as pltpu

EPS = 1e-5   # nn.BatchNorm2d default eps
LANE = 128   # TPU lane width


def _conv3x3_im2col(act, w_ref):
    """3x3 SAME conv as one MXU matmul. act: (bn, Hp, Wp, C) -> f32 (bn*Hp*Wp, Cout)."""
    bn, Hp, Wp, C = act.shape
    zc = jnp.zeros((bn, Hp, 1, C), act.dtype)
    padded = jnp.concatenate([zc, act, zc], axis=2)          # pad W with zeros
    zr = jnp.zeros((bn, 1, Wp + 2, C), act.dtype)
    padded = jnp.concatenate([zr, padded, zr], axis=1)       # pad H with zeros
    slab = jnp.concatenate(
        [padded[:, dy:dy + Hp, dx:dx + Wp, :] for dy in range(3) for dx in range(3)],
        axis=-1)                                             # (bn, Hp, Wp, 9*C)
    slab = slab.reshape(bn * Hp * Wp, 9 * C).astype(w_ref.dtype)
    return jnp.dot(slab, w_ref[...], preferred_element_type=jnp.float32)


def contracting_kernel(x_ref, w1_ref, s1_ref, b1_ref, w2_ref, s2_ref, b2_ref, o_ref):
    bn, _, _, Hp, Wp, C_in = x_ref.shape
    C_outp = o_ref.shape[-1]

    # --- MaxPool2d(2): reduce over the 2x2 window dims (already split in the wrapper) ---
    pooled = jnp.maximum(
        jnp.maximum(x_ref[:, 0, 0, :, :, :], x_ref[:, 0, 1, :, :, :]),
        jnp.maximum(x_ref[:, 1, 0, :, :, :], x_ref[:, 1, 1, :, :, :]))  # (bn, Hp, Wp, Cin)

    # --- Dropout(p) ---
    # TODO(synk): training-mode dropout (pltpu.prng_* mask + 1/(1-p) scaling) not
    # implemented; eval-mode identity semantics used.

    # --- Conv2d(3x3, pad=1, bias=False) #1 as a single im2col matmul + folded BN + ReLU ---
    acc1 = _conv3x3_im2col(pooled, w1_ref)                   # (bn*Hp*Wp, C_outp), f32
    y = jnp.maximum(acc1 * s1_ref[...] + b1_ref[...], 0.0)
    y = y.reshape(bn, Hp, Wp, C_outp)

    # --- Conv2d(3x3, pad=1, bias=False) #2 + folded BN + ReLU ---
    acc2 = _conv3x3_im2col(y, w2_ref)
    z = jnp.maximum(acc2 * s2_ref[...] + b2_ref[...], 0.0)
    o_ref[...] = z.reshape(bn, Hp, Wp, C_outp).astype(o_ref.dtype)


def init_params(key, in_channels, out_channels):
    ks = jax.random.split(key, 10)
    f32 = jnp.float32
    return dict(
        # conv weights stored HWIO (3,3,Cin,Cout)
        w1=0.1 * jax.random.normal(ks[0], (3, 3, in_channels, out_channels), f32),
        g1=1.0 + 0.1 * jax.random.normal(ks[1], (out_channels,), f32),
        be1=0.1 * jax.random.normal(ks[2], (out_channels,), f32),
        m1=0.1 * jax.random.normal(ks[3], (out_channels,), f32),
        v1=jnp.abs(jax.random.normal(ks[4], (out_channels,), f32)) + 0.5,
        w2=0.1 * jax.random.normal(ks[5], (3, 3, out_channels, out_channels), f32),
        g2=1.0 + 0.1 * jax.random.normal(ks[6], (out_channels,), f32),
        be2=0.1 * jax.random.normal(ks[7], (out_channels,), f32),
        m2=0.1 * jax.random.normal(ks[8], (out_channels,), f32),
        v2=jnp.abs(jax.random.normal(ks[9], (out_channels,), f32)) + 0.5,
    )


def _pick_batch_tile(N, Hp, Wp, target_rows=256):
    """Largest divisor of N such that bn*Hp*Wp does not exceed ~MXU height."""
    target = max(1, target_rows // max(1, Hp * Wp))
    bn = 1
    for d in range(1, N + 1):
        if N % d == 0 and d <= target:
            bn = d
    return bn


def contracting_forward(x_nchw, p, compute_dtype=jnp.bfloat16):
    N, C_in, H, W = x_nchw.shape
    assert H % 2 == 0 and W % 2 == 0
    Hp, Wp = H // 2, W // 2
    C_out = p["w1"].shape[-1]
    C_outp = ((C_out + LANE - 1) // LANE) * LANE   # lane-dense output channels

    # Fold BatchNorm (eval mode) into per-channel scale/bias; pad to C_outp.
    # Padded channels get scale=0, bias=0 -> stay exactly 0 through ReLU and conv2.
    def fold(g, be, m, v):
        s = g / jnp.sqrt(v + EPS)
        b = be - m * s
        pad = (0, C_outp - C_out)
        return jnp.pad(s, pad).reshape(1, C_outp), jnp.pad(b, pad).reshape(1, C_outp)

    s1, b1 = fold(p["g1"], p["be1"], p["m1"], p["v1"])
    s2, b2 = fold(p["g2"], p["be2"], p["m2"], p["v2"])

    # Conv weights (HWIO) -> im2col layout with zero-padded channels.
    w1 = jnp.pad(p["w1"], ((0, 0), (0, 0), (0, 0), (0, C_outp - C_out)))
    w1 = w1.reshape(9 * C_in, C_outp).astype(compute_dtype)
    w2 = jnp.pad(p["w2"], ((0, 0), (0, 0), (0, C_outp - C_out), (0, C_outp - C_out)))
    w2 = w2.reshape(9 * C_outp, C_outp).astype(compute_dtype)

    # One fused transpose: NCHW -> (N, 2, 2, Hp, Wp, Cin) with the 2x2 pool-window
    # elements as leading dims (no separate pool-window shuffle pass over HBM).
    xw = x_nchw.reshape(N, C_in, Hp, 2, Wp, 2).transpose(0, 3, 5, 2, 4, 1)

    bn = _pick_batch_tile(N, Hp, Wp)

    out = pl.pallas_call(
        contracting_kernel,
        out_shape=jax.ShapeDtypeStruct((N, Hp, Wp, C_outp), jnp.float32),
        grid_spec=pltpu.PrefetchScalarGridSpec(
            num_scalar_prefetch=0,
            grid=(N // bn,),
            in_specs=[
                pl.BlockSpec((bn, 2, 2, Hp, Wp, C_in), lambda n: (n, 0, 0, 0, 0, 0)),
                pl.BlockSpec((9 * C_in, C_outp), lambda n: (0, 0)),
                pl.BlockSpec((1, C_outp), lambda n: (0, 0)),
                pl.BlockSpec((1, C_outp), lambda n: (0, 0)),
                pl.BlockSpec((9 * C_outp, C_outp), lambda n: (0, 0)),
                pl.BlockSpec((1, C_outp), lambda n: (0, 0)),
                pl.BlockSpec((1, C_outp), lambda n: (0, 0)),
            ],
            out_specs=pl.BlockSpec((bn, Hp, Wp, C_outp), lambda n: (n, 0, 0, 0)),
        ),
        compiler_params=pltpu.CompilerParams(
            dimension_semantics=("parallel",),        # independent batch blocks -> megacore
            vmem_limit_bytes=48 * 1024 * 1024,
        ),
    )(xw, w1, s1, b1, w2, s2, b2)

    # TODO(synk): for large UNet feature maps (Hp,Wp >= 128 with C >= 256), also tile the
    # grid over Hp (with a +1 halo row in the index_map) so per-step VMEM fits v7x's 64 MiB.

    return jnp.transpose(out[..., :C_out], (0, 3, 1, 2))   # strip channel pad, back to NCHW


def reference_forward(x_nchw, p):
    """Pure-JAX reference (eval-mode semantics), for correctness check."""
    x = jnp.transpose(x_nchw, (0, 2, 3, 1))  # NHWC
    N, H, W, C_in = x.shape
    Hp, Wp = H // 2, W // 2
    pooled = jnp.max(x.reshape(N, Hp, 2, Wp, 2, C_in), axis=(2, 4))

    def conv_bn_relu(inp, w, g, be, m, v):
        y = jax.lax.conv_general_dilated(
            inp, w, window_strides=(1, 1), padding="SAME",
            dimension_numbers=("NHWC", "HWIO", "NHWC"))
        s = g / jnp.sqrt(v + EPS)
        return jnp.maximum(y * s + (be - m * s), 0.0)

    y = conv_bn_relu(pooled, p["w1"], p["g1"], p["be1"], p["m1"], p["v1"])
    y = conv_bn_relu(y, p["w2"], p["g2"], p["be2"], p["m2"], p["v2"])
    return jnp.transpose(y, (0, 3, 1, 2))


if __name__ == "__main__":
    key = jax.random.PRNGKey(0)
    kx, kp = jax.random.split(key)

    N, C_in, H, W = 2, 4, 16, 16
    C_out = 8
    # dropout prob p = 0.25; unused at eval (identity).

    x = jax.random.normal(kx, (N, C_in, H, W), jnp.float32)
    params = init_params(kp, C_in, C_out)

    ref = jax.block_until_ready(reference_forward(x, params))

    # Full-precision path: strict correctness check.
    out_f32 = jax.block_until_ready(
        contracting_forward(x, params, compute_dtype=jnp.float32))
    assert out_f32.shape == (N, C_out, H // 2, W // 2), out_f32.shape
    np.testing.assert_allclose(np.asarray(out_f32), np.asarray(ref), rtol=1e-3, atol=1e-3)

    # bf16 matmul-input path (v6e/v7x MXU-friendly), f32 accumulation: looser tolerance.
    out_bf16 = jax.block_until_ready(
        contracting_forward(x, params, compute_dtype=jnp.bfloat16))
    assert out_bf16.shape == (N, C_out, H // 2, W // 2), out_bf16.shape
    np.testing.assert_allclose(np.asarray(out_bf16), np.asarray(ref), rtol=8e-2, atol=8e-2)

    print("KERNEL_OK")
</pallas_src>

<mosaic_0001>
module attributes {stable_mosaic.version = 11 : i64} {
  func.func @contracting_kernel(%arg0: i32, %arg1: memref<2x2x2x8x8x4xf32, #tpu.memory_space<vmem>>, %arg2: memref<36x128xf32, #tpu.memory_space<vmem>>, %arg3: memref<1x128xf32, #tpu.memory_space<vmem>>, %arg4: memref<1x128xf32, #tpu.memory_space<vmem>>, %arg5: memref<1152x128xf32, #tpu.memory_space<vmem>>, %arg6: memref<1x128xf32, #tpu.memory_space<vmem>>, %arg7: memref<1x128xf32, #tpu.memory_space<vmem>>, %arg8: memref<2x8x8x128xf32, #tpu.memory_space<vmem>>) attributes {dimension_semantics = [#tpu.dimension_semantics<parallel>], iteration_bounds = array<i64: 1>, scalar_prefetch = 0 : i64, scratch_operands = 0 : i64, tpu.core_type = #tpu.core_type<tc>, window_params = [{transform_indices = @transform_0, window_bounds = array<i64: 2, 2, 2, 8, 8, 4>}, {pipeline_mode = #tpu.pipeline_mode<synchronous>, transform_indices = @transform_1, window_bounds = array<i64: 36, 128>}, {pipeline_mode = #tpu.pipeline_mode<synchronous>, transform_indices = @transform_2, window_bounds = array<i64: 1, 128>}, {pipeline_mode = #tpu.pipeline_mode<synchronous>, transform_indices = @transform_3, window_bounds = array<i64: 1, 128>}, {pipeline_mode = #tpu.pipeline_mode<synchronous>, transform_indices = @transform_4, window_bounds = array<i64: 1152, 128>}, {pipeline_mode = #tpu.pipeline_mode<synchronous>, transform_indices = @transform_5, window_bounds = array<i64: 1, 128>}, {pipeline_mode = #tpu.pipeline_mode<synchronous>, transform_indices = @transform_6, window_bounds = array<i64: 1, 128>}, {transform_indices = @transform_7, window_bounds = array<i64: 2, 8, 8, 128>}]} {
    %c0 = arith.constant 0 : index
    %c0_0 = arith.constant 0 : index
    %c0_1 = arith.constant 0 : index
    %c0_2 = arith.constant 0 : index
    %c0_3 = arith.constant 0 : index
    %c0_4 = arith.constant 0 : index
    %0 = vector.load %arg1[%c0, %c0_0, %c0_1, %c0_2, %c0_3, %c0_4] : memref<2x2x2x8x8x4xf32, #tpu.memory_space<vmem>>, vector<2x1x1x8x8x4xf32>
    %1 = vector.shape_cast %0 : vector<2x1x1x8x8x4xf32> to vector<2x8x8x4xf32>
    %c0_5 = arith.constant 0 : index
    %c0_6 = arith.constant 0 : index
    %c1 = arith.constant 1 : index
    %c0_7 = arith.constant 0 : index
    %c0_8 = arith.constant 0 : index
    %c0_9 = arith.constant 0 : index
    %2 = vector.load %arg1[%c0_5, %c0_6, %c1, %c0_7, %c0_8, %c0_9] : memref<2x2x2x8x8x4xf32, #tpu.memory_space<vmem>>, vector<2x1x1x8x8x4xf32>
    %3 = vector.shape_cast %2 : vector<2x1x1x8x8x4xf32> to vector<2x8x8x4xf32>
    %4 = arith.maximumf %1, %3 : vector<2x8x8x4xf32>
    %c0_10 = arith.constant 0 : index
    %c1_11 = arith.constant 1 : index
    %c0_12 = arith.constant 0 : index
    %c0_13 = arith.constant 0 : index
    %c0_14 = arith.constant 0 : index
    %c0_15 = arith.constant 0 : index
    %5 = vector.load %arg1[%c0_10, %c1_11, %c0_12, %c0_13, %c0_14, %c0_15] : memref<2x2x2x8x8x4xf32, #tpu.memory_space<vmem>>, vector<2x1x1x8x8x4xf32>
    %6 = vector.shape_cast %5 : vector<2x1x1x8x8x4xf32> to vector<2x8x8x4xf32>
    %c0_16 = arith.constant 0 : index
    %c1_17 = arith.constant 1 : index
    %c1_18 = arith.constant 1 : index
    %c0_19 = arith.constant 0 : index
    %c0_20 = arith.constant 0 : index
    %c0_21 = arith.constant 0 : index
    %7 = vector.load %arg1[%c0_16, %c1_17, %c1_18, %c0_19, %c0_20, %c0_21] : memref<2x2x2x8x8x4xf32, #tpu.memory_space<vmem>>, vector<2x1x1x8x8x4xf32>
    %8 = vector.shape_cast %7 : vector<2x1x1x8x8x4xf32> to vector<2x8x8x4xf32>
    %9 = arith.maximumf %6, %8 : vector<2x8x8x4xf32>
    %10 = arith.maximumf %4, %9 : vector<2x8x8x4xf32>
    %cst = arith.constant 0.000000e+00 : f32
    %11 = vector.broadcast %cst : f32 to vector<2x8x1x4xf32>
    %12 = tpu.concatenate %11, %10, %11 in 2 : vector<2x8x1x4xf32>, vector<2x8x8x4xf32>, vector<2x8x1x4xf32> -> vector<2x8x10x4xf32>
    %cst_22 = arith.constant 0.000000e+00 : f32
    %13 = vector.broadcast %cst_22 : f32 to vector<2x1x10x4xf32>
    %14 = tpu.concatenate %13, %12, %13 in 1 : vector<2x1x10x4xf32>, vector<2x8x10x4xf32>, vector<2x1x10x4xf32> -> vector<2x10x10x4xf32>
    %15 = vector.extract_strided_slice %14 {offsets = [0, 0, 0, 0], sizes = [2, 8, 8, 4], strides = [1, 1, 1, 1]} : vector<2x10x10x4xf32> to vector<2x8x8x4xf32>
    %16 = vector.extract_strided_slice %14 {offsets = [0, 0, 1, 0], sizes = [2, 8, 8, 4], strides = [1, 1, 1, 1]} : vector<2x10x10x4xf32> to vector<2x8x8x4xf32>
    %17 = vector.extract_strided_slice %14 {offsets = [0, 0, 2, 0], sizes = [2, 8, 8, 4], strides = [1, 1, 1, 1]} : vector<2x10x10x4xf32> to vector<2x8x8x4xf32>
    %18 = vector.extract_strided_slice %14 {offsets = [0, 1, 0, 0], sizes = [2, 8, 8, 4], strides = [1, 1, 1, 1]} : vector<2x10x10x4xf32> to vector<2x8x8x4xf32>
    %19 = vector.extract_strided_slice %14 {offsets = [0, 1, 1, 0], sizes = [2, 8, 8, 4], strides = [1, 1, 1, 1]} : vector<2x10x10x4xf32> to vector<2x8x8x4xf32>
    %20 = vector.extract_strided_slice %14 {offsets = [0, 1, 2, 0], sizes = [2, 8, 8, 4], strides = [1, 1, 1, 1]} : vector<2x10x10x4xf32> to vector<2x8x8x4xf32>
    %21 = vector.extract_strided_slice %14 {offsets = [0, 2, 0, 0], sizes = [2, 8, 8, 4], strides = [1, 1, 1, 1]} : vector<2x10x10x4xf32> to vector<2x8x8x4xf32>
    %22 = vector.extract_strided_slice %14 {offsets = [0, 2, 1, 0], sizes = [2, 8, 8, 4], strides = [1, 1, 1, 1]} : vector<2x10x10x4xf32> to vector<2x8x8x4xf32>
    %23 = vector.extract_strided_slice %14 {offsets = [0, 2, 2, 0], sizes = [2, 8, 8, 4], strides = [1, 1, 1, 1]} : vector<2x10x10x4xf32> to vector<2x8x8x4xf32>
    %24 = tpu.concatenate %15, %16, %17, %18, %19, %20, %21, %22, %23 in 3 : vector<2x8x8x4xf32>, vector<2x8x8x4xf32>, vector<2x8x8x4xf32>, vector<2x8x8x4xf32>, vector<2x8x8x4xf32>, vector<2x8x8x4xf32>, vector<2x8x8x4xf32>, vector<2x8x8x4xf32>, vector<2x8x8x4xf32> -> vector<2x8x8x36xf32>
    %25 = vector.shape_cast %24 : vector<2x8x8x36xf32> to vector<128x36xf32>
    %c0_23 = arith.constant 0 : index
    %c0_24 = arith.constant 0 : index
    %26 = vector.load %arg2[%c0_23, %c0_24] : memref<36x128xf32, #tpu.memory_space<vmem>>, vector<36x128xf32>
    %cst_25 = arith.constant dense<0.000000e+00> : vector<128x128xf32>
    %27 = tpu.matmul %25, %26, %cst_25 {dimension_numbers = #tpu.dot_dimension_numbers<[1], [0], [0], [1], [0, 0, 1, 1], [], []>} : vector<128x36xf32>, vector<36x128xf32>, vector<128x128xf32> -> vector<128x128xf32>
    %c0_26 = arith.constant 0 : index
    %c0_27 = arith.constant 0 : index
    %28 = vector.load %arg3[%c0_26, %c0_27] : memref<1x128xf32, #tpu.memory_space<vmem>>, vector<1x128xf32>
    %29 = vector.broadcast %28 : vector<1x128xf32> to vector<128x128xf32>
    %30 = arith.mulf %27, %29 : vector<128x128xf32>
    %c0_28 = arith.constant 0 : index
    %c0_29 = arith.constant 0 : index
    %31 = vector.load %arg4[%c0_28, %c0_29] : memref<1x128xf32, #tpu.memory_space<vmem>>, vector<1x128xf32>
    %32 = vector.broadcast %31 : vector<1x128xf32> to vector<128x128xf32>
    %33 = arith.addf %30, %32 : vector<128x128xf32>
    %cst_30 = arith.constant 0.000000e+00 : f32
    %34 = vector.broadcast %cst_30 : f32 to vector<128x128xf32>
    %35 = arith.maximumf %33, %34 : vector<128x128xf32>
    %36 = vector.shape_cast %35 : vector<128x128xf32> to vector<2x8x8x128xf32>
    %cst_31 = arith.constant 0.000000e+00 : f32
    %37 = vector.broadcast %cst_31 : f32 to vector<2x8x1x128xf32>
    %38 = tpu.concatenate %37, %36, %37 in 2 : vector<2x8x1x128xf32>, vector<2x8x8x128xf32>, vector<2x8x1x128xf32> -> vector<2x8x10x128xf32>
    %cst_32 = arith.constant 0.000000e+00 : f32
    %39 = vector.broadcast %cst_32 : f32 to vector<2x1x10x128xf32>
    %40 = tpu.concatenate %39, %38, %39 in 1 : vector<2x1x10x128xf32>, vector<2x8x10x128xf32>, vector<2x1x10x128xf32> -> vector<2x10x10x128xf32>
    %41 = vector.extract_strided_slice %40 {offsets = [0, 0, 0, 0], sizes = [2, 8, 8, 128], strides = [1, 1, 1, 1]} : vector<2x10x10x128xf32> to vector<2x8x8x128xf32>
    %42 = vector.extract_strided_slice %40 {offsets = [0, 0, 1, 0], sizes = [2, 8, 8, 128], strides = [1, 1, 1, 1]} : vector<2x10x10x128xf32> to vector<2x8x8x128xf32>
    %43 = vector.extract_strided_slice %40 {offsets = [0, 0, 2, 0], sizes = [2, 8, 8, 128], strides = [1, 1, 1, 1]} : vector<2x10x10x128xf32> to vector<2x8x8x128xf32>
    %44 = vector.extract_strided_slice %40 {offsets = [0, 1, 0, 0], sizes = [2, 8, 8, 128], strides = [1, 1, 1, 1]} : vector<2x10x10x128xf32> to vector<2x8x8x128xf32>
    %45 = vector.extract_strided_slice %40 {offsets = [0, 1, 1, 0], sizes = [2, 8, 8, 128], strides = [1, 1, 1, 1]} : vector<2x10x10x128xf32> to vector<2x8x8x128xf32>
    %46 = vector.extract_strided_slice %40 {offsets = [0, 1, 2, 0], sizes = [2, 8, 8, 128], strides = [1, 1, 1, 1]} : vector<2x10x10x128xf32> to vector<2x8x8x128xf32>
    %47 = vector.extract_strided_slice %40 {offsets = [0, 2, 0, 0], sizes = [2, 8, 8, 128], strides = [1, 1, 1, 1]} : vector<2x10x10x128xf32> to vector<2x8x8x128xf32>
    %48 = vector.extract_strided_slice %40 {offsets = [0, 2, 1, 0], sizes = [2, 8, 8, 128], strides = [1, 1, 1, 1]} : vector<2x10x10x128xf32> to vector<2x8x8x128xf32>
    %49 = vector.extract_strided_slice %40 {offsets = [0, 2, 2, 0], sizes = [2, 8, 8, 128], strides = [1, 1, 1, 1]} : vector<2x10x10x128xf32> to vector<2x8x8x128xf32>
    %50 = tpu.concatenate %41, %42, %43, %44, %45, %46, %47, %48, %49 in 3 : vector<2x8x8x128xf32>, vector<2x8x8x128xf32>, vector<2x8x8x128xf32>, vector<2x8x8x128xf32>, vector<2x8x8x128xf32>, vector<2x8x8x128xf32>, vector<2x8x8x128xf32>, vector<2x8x8x128xf32>, vector<2x8x8x128xf32> -> vector<2x8x8x1152xf32>
    %51 = vector.shape_cast %50 : vector<2x8x8x1152xf32> to vector<128x1152xf32>
    %c0_33 = arith.constant 0 : index
    %c0_34 = arith.constant 0 : index
    %52 = vector.load %arg5[%c0_33, %c0_34] : memref<1152x128xf32, #tpu.memory_space<vmem>>, vector<1152x128xf32>
    %cst_35 = arith.constant dense<0.000000e+00> : vector<128x128xf32>
    %53 = tpu.matmul %51, %52, %cst_35 {dimension_numbers = #tpu.dot_dimension_numbers<[1], [0], [0], [1], [0, 0, 1, 1], [], []>} : vector<128x1152xf32>, vector<1152x128xf32>, vector<128x128xf32> -> vector<128x128xf32>
    %c0_36 = arith.constant 0 : index
    %c0_37 = arith.constant 0 : index
    %54 = vector.load %arg6[%c0_36, %c0_37] : memref<1x128xf32, #tpu.memory_space<vmem>>, vector<1x128xf32>
    %55 = vector.broadcast %54 : vector<1x128xf32> to vector<128x128xf32>
    %56 = arith.mulf %53, %55 : vector<128x128xf32>
    %c0_38 = arith.constant 0 : index
    %c0_39 = arith.constant 0 : index
    %57 = vector.load %arg7[%c0_38, %c0_39] : memref<1x128xf32, #tpu.memory_space<vmem>>, vector<1x128xf32>
    %58 = vector.broadcast %57 : vector<1x128xf32> to vector<128x128xf32>
    %59 = arith.addf %56, %58 : vector<128x128xf32>
    %cst_40 = arith.constant 0.000000e+00 : f32
    %60 = vector.broadcast %cst_40 : f32 to vector<128x128xf32>
    %61 = arith.maximumf %59, %60 : vector<128x128xf32>
    %62 = vector.shape_cast %61 : vector<128x128xf32> to vector<2x8x8x128xf32>
    %c0_41 = arith.constant 0 : index
    %c0_42 = arith.constant 0 : index
    %c0_43 = arith.constant 0 : index
    %c0_44 = arith.constant 0 : index
    %63 = vector.load %arg8[%c0_41, %c0_42, %c0_43, %c0_44] : memref<2x8x8x128xf32, #tpu.memory_space<vmem>>, vector<2x8x8x128xf32>
    tpu.vector_store %arg8[%c0_41, %c0_42, %c0_43, %c0_44], %62 {strides = array<i32>} : memref<2x8x8x128xf32, #tpu.memory_space<vmem>>, vector<2x8x8x128xf32>,
    return
  }
  func.func @transform_0(%arg0: i32) -> (i32, i32, i32, i32, i32, i32) {
    %c0_i32 = arith.constant 0 : i32
    %c0_i32_0 = arith.constant 0 : i32
    %c0_i32_1 = arith.constant 0 : i32
    %c0_i32_2 = arith.constant 0 : i32
    %c0_i32_3 = arith.constant 0 : i32
    %c0_i32_4 = arith.constant 0 : i32
    return %arg0, %c0_i32, %c0_i32_0, %c0_i32_1, %c0_i32_2, %c0_i32_3 : i32, i32, i32, i32, i32, i32
  }
  func.func @transform_1(%arg0: i32) -> (i32, i32) {
    %c0_i32 = arith.constant 0 : i32
    %c0_i32_0 = arith.constant 0 : i32
    %c0_i32_1 = arith.constant 0 : i32
    return %c0_i32, %c0_i32_0 : i32, i32
  }
  func.func @transform_2(%arg0: i32) -> (i32, i32) {
    %c0_i32 = arith.constant 0 : i32
    %c0_i32_0 = arith.constant 0 : i32
    %c0_i32_1 = arith.constant 0 : i32
    return %c0_i32, %c0_i32_0 : i32, i32
  }
  func.func @transform_3(%arg0: i32) -> (i32, i32) {
    %c0_i32 = arith.constant 0 : i32
    %c0_i32_0 = arith.constant 0 : i32
    %c0_i32_1 = arith.constant 0 : i32
    return %c0_i32, %c0_i32_0 : i32, i32
  }
  func.func @transform_4(%arg0: i32) -> (i32, i32) {
    %c0_i32 = arith.constant 0 : i32
    %c0_i32_0 = arith.constant 0 : i32
    %c0_i32_1 = arith.constant 0 : i32
    return %c0_i32, %c0_i32_0 : i32, i32
  }
  func.func @transform_5(%arg0: i32) -> (i32, i32) {
    %c0_i32 = arith.constant 0 : i32
    %c0_i32_0 = arith.constant 0 : i32
    %c0_i32_1 = arith.constant 0 : i32
    return %c0_i32, %c0_i32_0 : i32, i32
  }
  func.func @transform_6(%arg0: i32) -> (i32, i32) {
    %c0_i32 = arith.constant 0 : i32
    %c0_i32_0 = arith.constant 0 : i32
    %c0_i32_1 = arith.constant 0 : i32
    return %c0_i32, %c0_i32_0 : i32, i32
  }
  func.func @transform_7(%arg0: i32) -> (i32, i32, i32, i32) {
    %c0_i32 = arith.constant 0 : i32
    %c0_i32_0 = arith.constant 0 : i32
    %c0_i32_1 = arith.constant 0 : i32
    %c0_i32_2 = arith.constant 0 : i32
    return %arg0, %c0_i32, %c0_i32_0, %c0_i32_1 : i32, i32, i32, i32
  }
}

</mosaic_0001>

<llo_original>
// kernel: tpu_custom_call.1
$region0: #{tpu_custom_call.1}
  #allocation0 [shape = 'u32[]', space=smem, size = 0x4, offset = 0x4, fixed_abs, tag = 'smem constant byte address 0x4 - core index']
  #allocation1 [shape = 'u32[72,128]{1,0:T(1,128)}', space=vmem, size = 0x9000, scoped, tag = 'internal scratch']
  %s0 = inlined_call_operand.vmem [shape: f32[2,2,2,8,8,4], index: 0, kind: input, shape index: {}]
  %s1 = inlined_call_operand.vmem [shape: f32[36,128], index: 1, kind: input, shape index: {}]
  %s2 = inlined_call_operand.vmem [shape: f32[1,128], index: 2, kind: input, shape index: {}]
  %s3 = inlined_call_operand.vmem [shape: f32[1,128], index: 3, kind: input, shape index: {}]
  %s4 = inlined_call_operand.hbm [shape: f32[1152,128], index: 4, kind: input, shape index: {}]
  %s5 = inlined_call_operand.vmem [shape: f32[1,128], index: 5, kind: input, shape index: {}]
  %s6 = inlined_call_operand.vmem [shape: f32[1,128], index: 6, kind: input, shape index: {}]
  %s7 = inlined_call_operand.hbm [shape: f32[2,8,8,128], index: 7, kind: output, shape index: {}]
  %s8 = sld [smem:[#allocation0]]
  $region42: #{tpu_custom_call.1} parent=0
    _
  %s10 = ssub.s32 1, %s8
  %s11 = scalar_select 0, %s10, %s8
  $region1: #{tpu_custom_call.1} parent=0
    #allocation2 [shape = 'u8[589824]{0}', space=vmem, size = 0x90000, scoped, tag = 'input window, operand 4, single buffered']
    #allocation3 [shape = 's32[1]{0}', space=sflag, size = 0x4, scoped, tag = 'scoped memory for tpu_custom_call.1']
    #allocation4 [shape = 's32[1]{0}', space=sflag, size = 0x4, scoped, tag = 'scoped memory for tpu_custom_call.1']
    #allocation5 [shape = 'u8[65536]{0}', space=vmem, size = 0x10000, scoped, tag = 'output window, operand 0, single buffered']
    %12 = vsyncpa [#allocation3], 0
    %13 = vsyncpa [#allocation4], 0
    // Predicated region
    $region2: #{tpu_custom_call.1} parent=1 // pred_check
      _
    $region3: #{tpu_custom_call.1} parent=1 // pred_check_branch
      %15 = sbr.rel (0) target = $region5
    $region4: #{tpu_custom_call.1} parent=1 // pred_region
      _
    $region5: #{tpu_custom_call.1} parent=1 // pred_fallthru
      _
    // Predicated region
    $region6: #{tpu_custom_call.1} parent=1 // pred_check
      _
    $region7: #{tpu_custom_call.1} parent=1 // pred_check_branch
      %17 = sbr.rel (0) target = $region9
    $region8: #{tpu_custom_call.1} parent=1 // pred_region
      _
    $region9: #{tpu_custom_call.1} parent=1 // pred_fallthru
      _
    // Predicated region
    $region10: #{tpu_custom_call.1} parent=1 // pred_check
      _
    $region11: #{tpu_custom_call.1} parent=1 // pred_check_branch
      %19 = sbr.rel (0) target = $region13
    $region12: #{tpu_custom_call.1} parent=1 // pred_region
      _
    $region13: #{tpu_custom_call.1} parent=1 // pred_fallthru
      _
    // Predicated region
    $region14: #{tpu_custom_call.1} parent=1 // pred_check
      _
    $region15: #{tpu_custom_call.1} parent=1 // pred_check_branch
      %21 = sbr.rel (0) target = $region17
    $region16: #{tpu_custom_call.1} parent=1 // pred_region
      _
    $region17: #{tpu_custom_call.1} parent=1 // pred_fallthru
      _
    // Predicated region
    $region18: #{tpu_custom_call.1} parent=1 // pred_check
      _
    $region19: #{tpu_custom_call.1} parent=1 // pred_check_branch
      %23 = sbr.rel (0) target = $region21
    $region20: #{tpu_custom_call.1} parent=1 // pred_region
      %25 = vsyncadd [#allocation3], 0
      %s26 = sshll.u32 %s4, 4
      %s27 = int_to_ptr.hbm [resolvable:$true] %s26
      %s28 = sshll.u32 [#allocation2], 4
      %s29 = int_to_ptr.vmem [resolvable:$true] %s28
      %34 = dma.hbm_to_vmem [thread:$0]  %s27, 18432, %s29, [#allocation3], 128, 128, 8
    $region21: #{tpu_custom_call.1} parent=1 // pred_fallthru
      _
    // Predicated region
    $region22: #{tpu_custom_call.1} parent=1 // pred_check
      _
    $region23: #{tpu_custom_call.1} parent=1 // pred_check_branch
      %36 = sbr.rel (0) target = $region25
    $region24: #{tpu_custom_call.1} parent=1 // pred_region
      _
    $region25: #{tpu_custom_call.1} parent=1 // pred_fallthru
      _
    // Predicated region
    $region26: #{tpu_custom_call.1} parent=1 // pred_check
      _
    $region27: #{tpu_custom_call.1} parent=1 // pred_check_branch
      %38 = sbr.rel (0) target = $region29
    $region28: #{tpu_custom_call.1} parent=1 // pred_region
      _
    $region29: #{tpu_custom_call.1} parent=1 // pred_fallthru
      _
    // Predicated region
    $region30: #{tpu_custom_call.1} parent=1 // pred_check
      _
    $region31: #{tpu_custom_call.1} parent=1 // pred_check_branch
      %40 = sbr.rel (0) target = $region33
    $region32: #{tpu_custom_call.1} parent=1 // pred_region
      %42 = dma.done [#allocation3], 18432
    $region33: #{tpu_custom_call.1} parent=1 // pred_fallthru
      _
    %v43 = vld [vmem:[%s0] sm:$0xff]
    %v44 = vld [vmem:[%s0 + $0x8] sm:$0xff]
    %v45 = vld [vmem:[%s0 + $0x10] sm:$0xff]
    %v46 = vld [vmem:[%s0 + $0x18] sm:$0xff]
    %v47 = vld [vmem:[%s0 + $0x20] sm:$0xff]
    %v48 = vld [vmem:[%s0 + $0x28] sm:$0xff]
    %v49 = vld [vmem:[%s0 + $0x30] sm:$0xff]
    %v50 = vld [vmem:[%s0 + $0x38] sm:$0xff]
    %v51 = vld [vmem:[%s0 + $0x100] sm:$0xff]
    %v52 = vld [vmem:[%s0 + $0x108] sm:$0xff]
    %v53 = vld [vmem:[%s0 + $0x110] sm:$0xff]
    %v54 = vld [vmem:[%s0 + $0x118] sm:$0xff]
    %v55 = vld [vmem:[%s0 + $0x120] sm:$0xff]
    %v56 = vld [vmem:[%s0 + $0x128] sm:$0xff]
    %v57 = vld [vmem:[%s0 + $0x130] sm:$0xff]
    %v58 = vld [vmem:[%s0 + $0x138] sm:$0xff]
    %s59 = scalar_lea.vmem %s0, 64
    %v60 = vld [vmem:[%s59] sm:$0xff]
    %v61 = vld [vmem:[%s59 + $0x8] sm:$0xff]
    %v62 = vld [vmem:[%s59 + $0x10] sm:$0xff]
    %v63 = vld [vmem:[%s59 + $0x18] sm:$0xff]
    %v64 = vld [vmem:[%s59 + $0x20] sm:$0xff]
    %v65 = vld [vmem:[%s59 + $0x28] sm:$0xff]
    %v66 = vld [vmem:[%s59 + $0x30] sm:$0xff]
    %v67 = vld [vmem:[%s59 + $0x38] sm:$0xff]
    %v68 = vld [vmem:[%s59 + $0x100] sm:$0xff]
    %v69 = vld [vmem:[%s59 + $0x108] sm:$0xff]
    %v70 = vld [vmem:[%s59 + $0x110] sm:$0xff]
    %v71 = vld [vmem:[%s59 + $0x118] sm:$0xff]
    %v72 = vld [vmem:[%s59 + $0x120] sm:$0xff]
    %v73 = vld [vmem:[%s59 + $0x128] sm:$0xff]
    %v74 = vld [vmem:[%s59 + $0x130] sm:$0xff]
    %v75 = vld [vmem:[%s59 + $0x138] sm:$0xff]
    %v76 = vmax.f32 %v43, %v60
    %v77 = vmax.f32 %v44, %v61
    %v78 = vmax.f32 %v45, %v62
    %v79 = vmax.f32 %v46, %v63
    %v80 = vmax.f32 %v47, %v64
    %v81 = vmax.f32 %v48, %v65
    %v82 = vmax.f32 %v49, %v66
    %v83 = vmax.f32 %v50, %v67
    %v84 = vmax.f32 %v51, %v68
    %v85 = vmax.f32 %v52, %v69
    %v86 = vmax.f32 %v53, %v70
    %v87 = vmax.f32 %v54, %v71
    %v88 = vmax.f32 %v55, %v72
    %v89 = vmax.f32 %v56, %v73
    %v90 = vmax.f32 %v57, %v74
    %v91 = vmax.f32 %v58, %v75
    %s92 = scalar_lea.vmem %s0, 128
    %v93 = vld [vmem:[%s92] sm:$0xff]
    %v94 = vld [vmem:[%s92 + $0x8] sm:$0xff]
    %v95 = vld [vmem:[%s92 + $0x10] sm:$0xff]
    %v96 = vld [vmem:[%s92 + $0x18] sm:$0xff]
    %v97 = vld [vmem:[%s92 + $0x20] sm:$0xff]
    %v98 = vld [vmem:[%s92 + $0x28] sm:$0xff]
    %v99 = vld [vmem:[%s92 + $0x30] sm:$0xff]
    %v100 = vld [vmem:[%s92 + $0x38] sm:$0xff]
    %v101 = vld [vmem:[%s92 + $0x100] sm:$0xff]
    %v102 = vld [vmem:[%s92 + $0x108] sm:$0xff]
    %v103 = vld [vmem:[%s92 + $0x110] sm:$0xff]
    %v104 = vld [vmem:[%s92 + $0x118] sm:$0xff]
    %v105 = vld [vmem:[%s92 + $0x120] sm:$0xff]
    %v106 = vld [vmem:[%s92 + $0x128] sm:$0xff]
    %v107 = vld [vmem:[%s92 + $0x130] sm:$0xff]
    %v108 = vld [vmem:[%s92 + $0x138] sm:$0xff]
    %s109 = scalar_lea.vmem %s0, 192
    %v110 = vld [vmem:[%s109] sm:$0xff]
    %v111 = vld [vmem:[%s109 + $0x8] sm:$0xff]
    %v112 = vld [vmem:[%s109 + $0x10] sm:$0xff]
    %v113 = vld [vmem:[%s109 + $0x18] sm:$0xff]
    %v114 = vld [vmem:[%s109 + $0x20] sm:$0xff]
    %v115 = vld [vmem:[%s109 + $0x28] sm:$0xff]
    %v116 = vld [vmem:[%s109 + $0x30] sm:$0xff]
    %v117 = vld [vmem:[%s109 + $0x38] sm:$0xff]
    %v118 = vld [vmem:[%s109 + $0x100] sm:$0xff]
    %v119 = vld [vmem:[%s109 + $0x108] sm:$0xff]
    %v120 = vld [vmem:[%s109 + $0x110] sm:$0xff]
    %v121 = vld [vmem:[%s109 + $0x118] sm:$0xff]
    %v122 = vld [vmem:[%s109 + $0x120] sm:$0xff]
    %v123 = vld [vmem:[%s109 + $0x128] sm:$0xff]
    %v124 = vld [vmem:[%s109 + $0x130] sm:$0xff]
    %v125 = vld [vmem:[%s109 + $0x138] sm:$0xff]
    %v126 = vmax.f32 %v93, %v110
    %v127 = vmax.f32 %v94, %v111
    %v128 = vmax.f32 %v95, %v112
    %v129 = vmax.f32 %v96, %v113
    %v130 = vmax.f32 %v97, %v114
    %v131 = vmax.f32 %v98, %v115
    %v132 = vmax.f32 %v99, %v116
    %v133 = vmax.f32 %v100, %v117
    %v134 = vmax.f32 %v101, %v118
    %v135 = vmax.f32 %v102, %v119
    %v136 = vmax.f32 %v103, %v120
    %v137 = vmax.f32 %v104, %v121
    %v138 = vmax.f32 %v105, %v122
    %v139 = vmax.f32 %v106, %v123
    %v140 = vmax.f32 %v107, %v124
    %v141 = vmax.f32 %v108, %v125
    %v142 = vmax.f32 %v76, %v126
    %v143 = vmax.f32 %v77, %v127
    %v144 = vmax.f32 %v78, %v128
    %v145 = vmax.f32 %v79, %v129
    %v146 = vmax.f32 %v80, %v130
    %v147 = vmax.f32 %v81, %v131
    %v148 = vmax.f32 %v82, %v132
    %v149 = vmax.f32 %v83, %v133
    %v150 = vmax.f32 %v84, %v134
    %v151 = vmax.f32 %v85, %v135
    %v152 = vmax.f32 %v86, %v136
    %v153 = vmax.f32 %v87, %v137
    %v154 = vmax.f32 %v88, %v138
    %v155 = vmax.f32 %v89, %v139
    %v156 = vmax.f32 %v90, %v140
    %v157 = vmax.f32 %v91, %v141
    %v174 = vrot.slane %v142, 7
    %v175 = vrot.slane %v143, 7
    %v176 = vrot.slane %v144, 7
    %v177 = vrot.slane %v145, 7
    %v178 = vrot.slane %v146, 7
    %v179 = vrot.slane %v147, 7
    %v180 = vrot.slane %v148, 7
    %v181 = vrot.slane %v149, 7
    %v182 = vrot.slane %v150, 7
    %v183 = vrot.slane %v151, 7
    %v184 = vrot.slane %v152, 7
    %v185 = vrot.slane %v153, 7
    %v186 = vrot.slane %v154, 7
    %v187 = vrot.slane %v155, 7
    %v188 = vrot.slane %v156, 7
    %v189 = vrot.slane %v157, 7
    %vm206 = vcmask 1040384
    %v207 = vsel %vm206, 0.0, %v174
    %v208 = vsel %vm206, 0.0, %v175
    %v209 = vsel %vm206, 0.0, %v176
    %v210 = vsel %vm206, 0.0, %v177
    %v211 = vsel %vm206, 0.0, %v178
    %v212 = vsel %vm206, 0.0, %v179
    %v213 = vsel %vm206, 0.0, %v180
    %v214 = vsel %vm206, 0.0, %v181
    %v215 = vsel %vm206, 0.0, %v182
    %v216 = vsel %vm206, 0.0, %v183
    %v217 = vsel %vm206, 0.0, %v184
    %v218 = vsel %vm206, 0.0, %v185
    %v219 = vsel %vm206, 0.0, %v186
    %v220 = vsel %vm206, 0.0, %v187
    %v221 = vsel %vm206, 0.0, %v188
    %v222 = vsel %vm206, 0.0, %v189
    %v223 = vsel %vm206, %v174, 0.0
    %v224 = vsel %vm206, %v175, 0.0
    %v225 = vsel %vm206, %v176, 0.0
    %v226 = vsel %vm206, %v177, 0.0
    %v227 = vsel %vm206, %v178, 0.0
    %v228 = vsel %vm206, %v179, 0.0
    %v229 = vsel %vm206, %v180, 0.0
    %v230 = vsel %vm206, %v181, 0.0
    %v231 = vsel %vm206, %v182, 0.0
    %v232 = vsel %vm206, %v183, 0.0
    %v233 = vsel %vm206, %v184, 0.0
    %v234 = vsel %vm206, %v185, 0.0
    %v235 = vsel %vm206, %v186, 0.0
    %v236 = vsel %vm206, %v187, 0.0
    %v237 = vsel %vm206, %v188, 0.0
    %v238 = vsel %vm206, %v189, 0.0
    %vm268 = vcmask 1046528
    %v269 = vrot.slane 0.0, 1
    %v270 = vsel %vm268, %v269, %v269
    %v271 = vrot.slane %v207, 1
    %v272 = vrot.slane %v223, 1
    %v273 = vsel %vm268, %v271, %v272
    %v274 = vrot.slane %v208, 1
    %v275 = vrot.slane %v224, 1
    %v276 = vsel %vm268, %v274, %v275
    %v277 = vrot.slane %v209, 1
    %v278 = vrot.slane %v225, 1
    %v279 = vsel %vm268, %v277, %v278
    %v280 = vrot.slane %v210, 1
    %v281 = vrot.slane %v226, 1
    %v282 = vsel %vm268, %v280, %v281
    %v283 = vrot.slane %v211, 1
    %v284 = vrot.slane %v227, 1
    %v285 = vsel %vm268, %v283, %v284
    %v286 = vrot.slane %v212, 1
    %v287 = vrot.slane %v228, 1
    %v288 = vsel %vm268, %v286, %v287
    %v289 = vrot.slane %v213, 1
    %v290 = vrot.slane %v229, 1
    %v291 = vsel %vm268, %v289, %v290
    %v292 = vrot.slane %v215, 1
    %v293 = vrot.slane %v231, 1
    %v294 = vsel %vm268, %v292, %v293
    %v295 = vrot.slane %v216, 1
    %v296 = vrot.slane %v232, 1
    %v297 = vsel %vm268, %v295, %v296
    %v298 = vrot.slane %v217, 1
    %v299 = vrot.slane %v233, 1
    %v300 = vsel %vm268, %v298, %v299
    %v301 = vrot.slane %v218, 1
    %v302 = vrot.slane %v234, 1
    %v303 = vsel %vm268, %v301, %v302
    %v304 = vrot.slane %v219, 1
    %v305 = vrot.slane %v235, 1
    %v306 = vsel %vm268, %v304, %v305
    %v307 = vrot.slane %v220, 1
    %v308 = vrot.slane %v236, 1
    %v309 = vsel %vm268, %v307, %v308
    %v310 = vrot.slane %v221, 1
    %v311 = vrot.slane %v237, 1
    %v312 = vsel %vm268, %v310, %v311
    %313 = vrot.lane.b32.xlu0 %v270, 4
    %v314 = vpop.permute.xlu0 %313
    %315 = vrot.lane.b32.xlu0 %v273, 4
    %v316 = vpop.permute.xlu0 %315
    %317 = vrot.lane.b32.xlu0 %v276, 4
    %v318 = vpop.permute.xlu0 %317
    %319 = vrot.lane.b32.xlu0 %v279, 4
    %v320 = vpop.permute.xlu0 %319
    %321 = vrot.lane.b32.xlu0 %v282, 4
    %v322 = vpop.permute.xlu0 %321
    %323 = vrot.lane.b32.xlu0 %v285, 4
    %v324 = vpop.permute.xlu0 %323
    %325 = vrot.lane.b32.xlu0 %v288, 4
    %v326 = vpop.permute.xlu0 %325
    %327 = vrot.lane.b32.xlu0 %v291, 4
    %v328 = vpop.permute.xlu0 %327
    %329 = vrot.lane.b32.xlu0 %v294, 4
    %v330 = vpop.permute.xlu0 %329
    %331 = vrot.lane.b32.xlu0 %v297, 4
    %v332 = vpop.permute.xlu0 %331
    %333 = vrot.lane.b32.xlu0 %v300, 4
    %v334 = vpop.permute.xlu0 %333
    %335 = vrot.lane.b32.xlu0 %v303, 4
    %v336 = vpop.permute.xlu0 %335
    %337 = vrot.lane.b32.xlu0 %v306, 4
    %v338 = vpop.permute.xlu0 %337
    %339 = vrot.lane.b32.xlu0 %v309, 4
    %v340 = vpop.permute.xlu0 %339
    %341 = vrot.lane.b32.xlu0 %v312, 4
    %v342 = vpop.permute.xlu0 %341
    %vm358 = vcmask 1045504
    %v359 = vrot.slane 0.0, 2
    %v360 = vsel %vm358, %v359, %v359
    %v361 = vrot.slane %v207, 2
    %v362 = vrot.slane %v223, 2
    %v363 = vsel %vm358, %v361, %v362
    %v364 = vrot.slane %v208, 2
    %v365 = vrot.slane %v224, 2
    %v366 = vsel %vm358, %v364, %v365
    %v367 = vrot.slane %v209, 2
    %v368 = vrot.slane %v225, 2
    %v369 = vsel %vm358, %v367, %v368
    %v370 = vrot.slane %v210, 2
    %v371 = vrot.slane %v226, 2
    %v372 = vsel %vm358, %v370, %v371
    %v373 = vrot.slane %v211, 2
    %v374 = vrot.slane %v227, 2
    %v375 = vsel %vm358, %v373, %v374
    %v376 = vrot.slane %v212, 2
    %v377 = vrot.slane %v228, 2
    %v378 = vsel %vm358, %v376, %v377
    %v379 = vrot.slane %v213, 2
    %v380 = vrot.slane %v229, 2
    %v381 = vsel %vm358, %v379, %v380
    %v382 = vrot.slane %v215, 2
    %v383 = vrot.slane %v231, 2
    %v384 = vsel %vm358, %v382, %v383
    %v385 = vrot.slane %v216, 2
    %v386 = vrot.slane %v232, 2
    %v387 = vsel %vm358, %v385, %v386
    %v388 = vrot.slane %v217, 2
    %v389 = vrot.slane %v233, 2
    %v390 = vsel %vm358, %v388, %v389
    %v391 = vrot.slane %v218, 2
    %v392 = vrot.slane %v234, 2
    %v393 = vsel %vm358, %v391, %v392
    %v394 = vrot.slane %v219, 2
    %v395 = vrot.slane %v235, 2
    %v396 = vsel %vm358, %v394, %v395
    %v397 = vrot.slane %v220, 2
    %v398 = vrot.slane %v236, 2
    %v399 = vsel %vm358, %v397, %v398
    %v400 = vrot.slane %v221, 2
    %v401 = vrot.slane %v237, 2
    %v402 = vsel %vm358, %v400, %v401
    %403 = vrot.lane.b32.xlu0 %v360, 8
    %v404 = vpop.permute.xlu0 %403
    %405 = vrot.lane.b32.xlu0 %v363, 8
    %v406 = vpop.permute.xlu0 %405
    %407 = vrot.lane.b32.xlu0 %v366, 8
    %v408 = vpop.permute.xlu0 %407
    %409 = vrot.lane.b32.xlu0 %v369, 8
    %v410 = vpop.permute.xlu0 %409
    %411 = vrot.lane.b32.xlu0 %v372, 8
    %v412 = vpop.permute.xlu0 %411
    %413 = vrot.lane.b32.xlu0 %v375, 8
    %v414 = vpop.permute.xlu0 %413
    %415 = vrot.lane.b32.xlu0 %v378, 8
    %v416 = vpop.permute.xlu0 %415
    %417 = vrot.lane.b32.xlu0 %v381, 8
    %v418 = vpop.permute.xlu0 %417
    %419 = vrot.lane.b32.xlu0 %v384, 8
    %v420 = vpop.permute.xlu0 %419
    %421 = vrot.lane.b32.xlu0 %v387, 8
    %v422 = vpop.permute.xlu0 %421
    %423 = vrot.lane.b32.xlu0 %v390, 8
    %v424 = vpop.permute.xlu0 %423
    %425 = vrot.lane.b32.xlu0 %v393, 8
    %v426 = vpop.permute.xlu0 %425
    %427 = vrot.lane.b32.xlu0 %v396, 8
    %v428 = vpop.permute.xlu0 %427
    %429 = vrot.lane.b32.xlu0 %v399, 8
    %v430 = vpop.permute.xlu0 %429
    %431 = vrot.lane.b32.xlu0 %v402, 8
    %v432 = vpop.permute.xlu0 %431
    %450 = vrot.lane.b32.xlu0 %v207, 12
    %v451 = vpop.permute.xlu0 %450
    %452 = vrot.lane.b32.xlu0 %v208, 12
    %v453 = vpop.permute.xlu0 %452
    %454 = vrot.lane.b32.xlu0 %v209, 12
    %v455 = vpop.permute.xlu0 %454
    %456 = vrot.lane.b32.xlu0 %v210, 12
    %v457 = vpop.permute.xlu0 %456
    %458 = vrot.lane.b32.xlu0 %v211, 12
    %v459 = vpop.permute.xlu0 %458
    %460 = vrot.lane.b32.xlu0 %v212, 12
    %v461 = vpop.permute.xlu0 %460
    %462 = vrot.lane.b32.xlu0 %v213, 12
    %v463 = vpop.permute.xlu0 %462
    %464 = vrot.lane.b32.xlu0 %v214, 12
    %v465 = vpop.permute.xlu0 %464
    %466 = vrot.lane.b32.xlu0 %v215, 12
    %v467 = vpop.permute.xlu0 %466
    %468 = vrot.lane.b32.xlu0 %v216, 12
    %v469 = vpop.permute.xlu0 %468
    %470 = vrot.lane.b32.xlu0 %v217, 12
    %v471 = vpop.permute.xlu0 %470
    %472 = vrot.lane.b32.xlu0 %v218, 12
    %v473 = vpop.permute.xlu0 %472
    %474 = vrot.lane.b32.xlu0 %v219, 12
    %v475 = vpop.permute.xlu0 %474
    %476 = vrot.lane.b32.xlu0 %v220, 12
    %v477 = vpop.permute.xlu0 %476
    %478 = vrot.lane.b32.xlu0 %v221, 12
    %v479 = vpop.permute.xlu0 %478
    %480 = vrot.lane.b32.xlu0 %v222, 12
    %v481 = vpop.permute.xlu0 %480
    %v500 = vrot.slane %v214, 1
    %v501 = vrot.slane %v230, 1
    %v502 = vsel %vm268, %v500, %v501
    %v503 = vrot.slane %v222, 1
    %v504 = vrot.slane %v238, 1
    %v505 = vsel %vm268, %v503, %v504
    %506 = vrot.lane.b32.xlu0 %v273, 16
    %v507 = vpop.permute.xlu0 %506
    %508 = vrot.lane.b32.xlu0 %v276, 16
    %v509 = vpop.permute.xlu0 %508
    %510 = vrot.lane.b32.xlu0 %v279, 16
    %v511 = vpop.permute.xlu0 %510
    %512 = vrot.lane.b32.xlu0 %v282, 16
    %v513 = vpop.permute.xlu0 %512
    %514 = vrot.lane.b32.xlu0 %v285, 16
    %v515 = vpop.permute.xlu0 %514
    %516 = vrot.lane.b32.xlu0 %v288, 16
    %v517 = vpop.permute.xlu0 %516
    %518 = vrot.lane.b32.xlu0 %v291, 16
    %v519 = vpop.permute.xlu0 %518
    %520 = vrot.lane.b32.xlu0 %v502, 16
    %v521 = vpop.permute.xlu0 %520
    %522 = vrot.lane.b32.xlu0 %v294, 16
    %v523 = vpop.permute.xlu0 %522
    %524 = vrot.lane.b32.xlu0 %v297, 16
    %v525 = vpop.permute.xlu0 %524
    %526 = vrot.lane.b32.xlu0 %v300, 16
    %v527 = vpop.permute.xlu0 %526
    %528 = vrot.lane.b32.xlu0 %v303, 16
    %v529 = vpop.permute.xlu0 %528
    %530 = vrot.lane.b32.xlu0 %v306, 16
    %v531 = vpop.permute.xlu0 %530
    %532 = vrot.lane.b32.xlu0 %v309, 16
    %v533 = vpop.permute.xlu0 %532
    %534 = vrot.lane.b32.xlu0 %v312, 16
    %v535 = vpop.permute.xlu0 %534
    %536 = vrot.lane.b32.xlu0 %v505, 16
    %v537 = vpop.permute.xlu0 %536
    %v554 = vrot.slane %v214, 2
    %v555 = vrot.slane %v230, 2
    %v556 = vsel %vm358, %v554, %v555
    %v557 = vrot.slane %v222, 2
    %v558 = vrot.slane %v238, 2
    %v559 = vsel %vm358, %v557, %v558
    %560 = vrot.lane.b32.xlu0 %v363, 20
    %v561 = vpop.permute.xlu0 %560
    %562 = vrot.lane.b32.xlu0 %v366, 20
    %v563 = vpop.permute.xlu0 %562
    %564 = vrot.lane.b32.xlu0 %v369, 20
    %v565 = vpop.permute.xlu0 %564
    %566 = vrot.lane.b32.xlu0 %v372, 20
    %v567 = vpop.permute.xlu0 %566
    %568 = vrot.lane.b32.xlu0 %v375, 20
    %v569 = vpop.permute.xlu0 %568
    %570 = vrot.lane.b32.xlu0 %v378, 20
    %v571 = vpop.permute.xlu0 %570
    %572 = vrot.lane.b32.xlu0 %v381, 20
    %v573 = vpop.permute.xlu0 %572
    %574 = vrot.lane.b32.xlu0 %v556, 20
    %v575 = vpop.permute.xlu0 %574
    %576 = vrot.lane.b32.xlu0 %v384, 20
    %v577 = vpop.permute.xlu0 %576
    %578 = vrot.lane.b32.xlu0 %v387, 20
    %v579 = vpop.permute.xlu0 %578
    %580 = vrot.lane.b32.xlu0 %v390, 20
    %v581 = vpop.permute.xlu0 %580
    %582 = vrot.lane.b32.xlu0 %v393, 20
    %v583 = vpop.permute.xlu0 %582
    %584 = vrot.lane.b32.xlu0 %v396, 20
    %v585 = vpop.permute.xlu0 %584
    %586 = vrot.lane.b32.xlu0 %v399, 20
    %v587 = vpop.permute.xlu0 %586
    %588 = vrot.lane.b32.xlu0 %v402, 20
    %v589 = vpop.permute.xlu0 %588
    %590 = vrot.lane.b32.xlu0 %v559, 20
    %v591 = vpop.permute.xlu0 %590
    %608 = vrot.lane.b32.xlu0 %v208, 24
    %v609 = vpop.permute.xlu0 %608
    %610 = vrot.lane.b32.xlu0 %v209, 24
    %v611 = vpop.permute.xlu0 %610
    %612 = vrot.lane.b32.xlu0 %v210, 24
    %v613 = vpop.permute.xlu0 %612
    %614 = vrot.lane.b32.xlu0 %v211, 24
    %v615 = vpop.permute.xlu0 %614
    %616 = vrot.lane.b32.xlu0 %v212, 24
    %v617 = vpop.permute.xlu0 %616
    %618 = vrot.lane.b32.xlu0 %v213, 24
    %v619 = vpop.permute.xlu0 %618
    %620 = vrot.lane.b32.xlu0 %v214, 24
    %v621 = vpop.permute.xlu0 %620
    %622 = vrot.lane.b32.xlu0 0.0, 24
    %v623 = vpop.permute.xlu0 %622
    %624 = vrot.lane.b32.xlu0 %v216, 24
    %v625 = vpop.permute.xlu0 %624
    %626 = vrot.lane.b32.xlu0 %v217, 24
    %v627 = vpop.permute.xlu0 %626
    %628 = vrot.lane.b32.xlu0 %v218, 24
    %v629 = vpop.permute.xlu0 %628
    %630 = vrot.lane.b32.xlu0 %v219, 24
    %v631 = vpop.permute.xlu0 %630
    %632 = vrot.lane.b32.xlu0 %v220, 24
    %v633 = vpop.permute.xlu0 %632
    %634 = vrot.lane.b32.xlu0 %v221, 24
    %v635 = vpop.permute.xlu0 %634
    %636 = vrot.lane.b32.xlu0 %v222, 24
    %v637 = vpop.permute.xlu0 %636
    %653 = vrot.lane.b32.xlu0 %v276, 28
    %v654 = vpop.permute.xlu0 %653
    %655 = vrot.lane.b32.xlu0 %v279, 28
    %v656 = vpop.permute.xlu0 %655
    %657 = vrot.lane.b32.xlu0 %v282, 28
    %v658 = vpop.permute.xlu0 %657
    %659 = vrot.lane.b32.xlu0 %v285, 28
    %v660 = vpop.permute.xlu0 %659
    %661 = vrot.lane.b32.xlu0 %v288, 28
    %v662 = vpop.permute.xlu0 %661
    %663 = vrot.lane.b32.xlu0 %v291, 28
    %v664 = vpop.permute.xlu0 %663
    %665 = vrot.lane.b32.xlu0 %v502, 28
    %v666 = vpop.permute.xlu0 %665
    %667 = vrot.lane.b32.xlu0 %v270, 28
    %v668 = vpop.permute.xlu0 %667
    %669 = vrot.lane.b32.xlu0 %v297, 28
    %v670 = vpop.permute.xlu0 %669
    %671 = vrot.lane.b32.xlu0 %v300, 28
    %v672 = vpop.permute.xlu0 %671
    %673 = vrot.lane.b32.xlu0 %v303, 28
    %v674 = vpop.permute.xlu0 %673
    %675 = vrot.lane.b32.xlu0 %v306, 28
    %v676 = vpop.permute.xlu0 %675
    %677 = vrot.lane.b32.xlu0 %v309, 28
    %v678 = vpop.permute.xlu0 %677
    %679 = vrot.lane.b32.xlu0 %v312, 28
    %v680 = vpop.permute.xlu0 %679
    %681 = vrot.lane.b32.xlu0 %v505, 28
    %v682 = vpop.permute.xlu0 %681
    %698 = vrot.lane.b32.xlu0 %v366, 32
    %v699 = vpop.permute.xlu0 %698
    %700 = vrot.lane.b32.xlu0 %v369, 32
    %v701 = vpop.permute.xlu0 %700
    %702 = vrot.lane.b32.xlu0 %v372, 32
    %v703 = vpop.permute.xlu0 %702
    %704 = vrot.lane.b32.xlu0 %v375, 32
    %v705 = vpop.permute.xlu0 %704
    %706 = vrot.lane.b32.xlu0 %v378, 32
    %v707 = vpop.permute.xlu0 %706
    %708 = vrot.lane.b32.xlu0 %v381, 32
    %v709 = vpop.permute.xlu0 %708
    %710 = vrot.lane.b32.xlu0 %v556, 32
    %v711 = vpop.permute.xlu0 %710
    %712 = vrot.lane.b32.xlu0 %v360, 32
    %v713 = vpop.permute.xlu0 %712
    %714 = vrot.lane.b32.xlu0 %v387, 32
    %v715 = vpop.permute.xlu0 %714
    %716 = vrot.lane.b32.xlu0 %v390, 32
    %v717 = vpop.permute.xlu0 %716
    %718 = vrot.lane.b32.xlu0 %v393, 32
    %v719 = vpop.permute.xlu0 %718
    %720 = vrot.lane.b32.xlu0 %v396, 32
    %v721 = vpop.permute.xlu0 %720
    %722 = vrot.lane.b32.xlu0 %v399, 32
    %v723 = vpop.permute.xlu0 %722
    %724 = vrot.lane.b32.xlu0 %v402, 32
    %v725 = vpop.permute.xlu0 %724
    %726 = vrot.lane.b32.xlu0 %v559, 32
    %v727 = vpop.permute.xlu0 %726
    %vm743 = vcmask 31744
    %v744 = vsel %vm743, 0.0, %v314
    %v745 = vsel %vm743, %v207, %v316
    %v746 = vsel %vm743, %v208, %v318
    %v747 = vsel %vm743, %v209, %v320
    %v748 = vsel %vm743, %v210, %v322
    %v749 = vsel %vm743, %v211, %v324
    %v750 = vsel %vm743, %v212, %v326
    %v751 = vsel %vm743, %v213, %v328
    %v752 = vsel %vm743, %v215, %v330
    %v753 = vsel %vm743, %v216, %v332
    %v754 = vsel %vm743, %v217, %v334
    %v755 = vsel %vm743, %v218, %v336
    %v756 = vsel %vm743, %v219, %v338
    %v757 = vsel %vm743, %v220, %v340
    %v758 = vsel %vm743, %v221, %v342
    %vm759 = vcmask 64512
    %v760 = vsel %vm759, %v744, %v404
    %v761 = vsel %vm759, %v745, %v406
    %v762 = vsel %vm759, %v746, %v408
    %v763 = vsel %vm759, %v747, %v410
    %v764 = vsel %vm759, %v748, %v412
    %v765 = vsel %vm759, %v749, %v414
    %v766 = vsel %vm759, %v750, %v416
    %v767 = vsel %vm759, %v751, %v418
    %v768 = vsel %vm759, %v752, %v420
    %v769 = vsel %vm759, %v753, %v422
    %v770 = vsel %vm759, %v754, %v424
    %v771 = vsel %vm759, %v755, %v426
    %v772 = vsel %vm759, %v756, %v428
    %v773 = vsel %vm759, %v757, %v430
    %v774 = vsel %vm759, %v758, %v432
    %vm775 = vcmask 97280
    %v776 = vsel %vm775, %v760, %v451
    %v777 = vsel %vm775, %v761, %v453
    %v778 = vsel %vm775, %v762, %v455
    %v779 = vsel %vm775, %v763, %v457
    %v780 = vsel %vm775, %v764, %v459
    %v781 = vsel %vm775, %v765, %v461
    %v782 = vsel %vm775, %v766, %v463
    %v783 = vsel %vm775, %v767, %v465
    %v784 = vsel %vm775, %v760, %v467
    %v785 = vsel %vm775, %v768, %v469
    %v786 = vsel %vm775, %v769, %v471
    %v787 = vsel %vm775, %v770, %v473
    %v788 = vsel %vm775, %v771, %v475
    %v789 = vsel %vm775, %v772, %v477
    %v790 = vsel %vm775, %v773, %v479
    %v791 = vsel %vm775, %v774, %v481
    %vm792 = vcmask 130048
    %v793 = vsel %vm792, %v776, %v507
    %v794 = vsel %vm792, %v777, %v509
    %v795 = vsel %vm792, %v778, %v511
    %v796 = vsel %vm792, %v779, %v513
    %v797 = vsel %vm792, %v780, %v515
    %v798 = vsel %vm792, %v781, %v517
    %v799 = vsel %vm792, %v782, %v519
    %v800 = vsel %vm792, %v783, %v521
    %v801 = vsel %vm792, %v784, %v523
    %v802 = vsel %vm792, %v785, %v525
    %v803 = vsel %vm792, %v786, %v527
    %v804 = vsel %vm792, %v787, %v529
    %v805 = vsel %vm792, %v788, %v531
    %v806 = vsel %vm792, %v789, %v533
    %v807 = vsel %vm792, %v790, %v535
    %v808 = vsel %vm792, %v791, %v537
    %vm809 = vcmask 162816
    %v810 = vsel %vm809, %v793, %v561
    %v811 = vsel %vm809, %v794, %v563
    %v812 = vsel %vm809, %v795, %v565
    %v813 = vsel %vm809, %v796, %v567
    %v814 = vsel %vm809, %v797, %v569
    %v815 = vsel %vm809, %v798, %v571
    %v816 = vsel %vm809, %v799, %v573
    %v817 = vsel %vm809, %v800, %v575
    %v818 = vsel %vm809, %v801, %v577
    %v819 = vsel %vm809, %v802, %v579
    %v820 = vsel %vm809, %v803, %v581
    %v821 = vsel %vm809, %v804, %v583
    %v822 = vsel %vm809, %v805, %v585
    %v823 = vsel %vm809, %v806, %v587
    %v824 = vsel %vm809, %v807, %v589
    %v825 = vsel %vm809, %v808, %v591
    %vm826 = vcmask 195584
    %v827 = vsel %vm826, %v810, %v609
    %v828 = vsel %vm826, %v811, %v611
    %v829 = vsel %vm826, %v812, %v613
    %v830 = vsel %vm826, %v813, %v615
    %v831 = vsel %vm826, %v814, %v617
    %v832 = vsel %vm826, %v815, %v619
    %v833 = vsel %vm826, %v816, %v621
    %v834 = vsel %vm826, %v817, %v623
    %v835 = vsel %vm826, %v818, %v625
    %v836 = vsel %vm826, %v819, %v627
    %v837 = vsel %vm826, %v820, %v629
    %v838 = vsel %vm826, %v821, %v631
    %v839 = vsel %vm826, %v822, %v633
    %v840 = vsel %vm826, %v823, %v635
    %v841 = vsel %vm826, %v824, %v637
    %v842 = vsel %vm826, %v825, %v623
    %vm843 = vcmask 228352
    %v844 = vsel %vm843, %v827, %v654
    %v845 = vsel %vm843, %v828, %v656
    %v846 = vsel %vm843, %v829, %v658
    %v847 = vsel %vm843, %v830, %v660
    %v848 = vsel %vm843, %v831, %v662
    %v849 = vsel %vm843, %v832, %v664
    %v850 = vsel %vm843, %v833, %v666
    %v851 = vsel %vm843, %v834, %v668
    %v852 = vsel %vm843, %v835, %v670
    %v853 = vsel %vm843, %v836, %v672
    %v854 = vsel %vm843, %v837, %v674
    %v855 = vsel %vm843, %v838, %v676
    %v856 = vsel %vm843, %v839, %v678
    %v857 = vsel %vm843, %v840, %v680
    %v858 = vsel %vm843, %v841, %v682
    %v859 = vsel %vm843, %v842, %v668
    %vm860 = vcmask 261120
    %v861 = vsel %vm860, %v844, %v699
    %v862 = vsel %vm860, %v845, %v701
    %v863 = vsel %vm860, %v846, %v703
    %v864 = vsel %vm860, %v847, %v705
    %v865 = vsel %vm860, %v848, %v707
    %v866 = vsel %vm860, %v849, %v709
    %v867 = vsel %vm860, %v850, %v711
    %v868 = vsel %vm860, %v851, %v713
    %v869 = vsel %vm860, %v852, %v715
    %v870 = vsel %vm860, %v853, %v717
    %v871 = vsel %vm860, %v854, %v719
    %v872 = vsel %vm860, %v855, %v721
    %v873 = vsel %vm860, %v856, %v723
    %v874 = vsel %vm860, %v857, %v725
    %v875 = vsel %vm860, %v858, %v727
    %v876 = vsel %vm860, %v859, %v713
    %v877 = vld [vmem:[%s1] sm:$0xff]
    %v878 = vld [vmem:[%s1 + $0x8] sm:$0xff]
    %v879 = vld [vmem:[%s1 + $0x10] sm:$0xff]
    %v880 = vld [vmem:[%s1 + $0x18] sm:$0xff]
    %v881 = vld [vmem:[%s1 + $0x20] sm:$0xf]
    %vm882 = vcmask 293888
    %v884 = vsel %vm882, %v861, 0
    %v887 = vsel %vm882, %v862, 0
    %v890 = vsel %vm882, %v863, 0
    %v893 = vsel %vm882, %v864, 0
    %v896 = vsel %vm882, %v865, 0
    %v899 = vsel %vm882, %v866, 0
    %v902 = vsel %vm882, %v867, 0
    %v905 = vsel %vm882, %v868, 0
    %v908 = vsel %vm882, %v869, 0
    %v911 = vsel %vm882, %v870, 0
    %v914 = vsel %vm882, %v871, 0
    %v917 = vsel %vm882, %v872, 0
    %v920 = vsel %vm882, %v873, 0
    %v923 = vsel %vm882, %v874, 0
    %v926 = vsel %vm882, %v875, 0
    %v929 = vsel %vm882, %v876, 0
    %vm931 = vcmask 1043456
    %v933 = vsel %vm931, %v881, 0
    %935 = vmatpush.msra.mxu0 0.0
    %936 = vmatpush.msra.mxu0 0.0
    %937 = vmatpush.msra.mxu0 0.0
    %938 = vmatpush.msra.mxu0 0.0
    %939 = vmatpush.msra.mxu0 0.0
    %940 = vmatpush.msra.mxu0 0.0
    %941 = vmatpush.msra.mxu0 0.0
    %942 = vmatpush.msra.mxu0 0.0
    %943 = vmatpush.msra.mxu0 0.0
    %944 = vmatpush.msra.mxu0 0.0
    %945 = vmatpush.msra.mxu0 0.0
    %946 = vmatpush.msra.mxu0 %v933
    %947 = vmatpush.msra.mxu0 %v880
    %948 = vmatpush.msra.mxu0 %v879
    %949 = vmatpush.msra.mxu0 %v878
    %950 = vmatpush.msra.mxu0 %v877
    %951 = vmatmul.f32.gmra.mxu0 %v884
    %v952 = vpop.f32.mrf.mxu0
    %v953 = vadd.f32 0.0, %v952
    %954 = vmatmul.f32.gmra.mxu0 %v887
    %v955 = vpop.f32.mrf.mxu0
    %v956 = vadd.f32 0.0, %v955
    %957 = vmatmul.f32.gmra.mxu0 %v890
    %v958 = vpop.f32.mrf.mxu0
    %v959 = vadd.f32 0.0, %v958
    %960 = vmatmul.f32.gmra.mxu0 %v893
    %v961 = vpop.f32.mrf.mxu0
    %v962 = vadd.f32 0.0, %v961
    %963 = vmatmul.f32.gmra.mxu0 %v896
    %v964 = vpop.f32.mrf.mxu0
    %v965 = vadd.f32 0.0, %v964
    %966 = vmatmul.f32.gmra.mxu0 %v899
    %v967 = vpop.f32.mrf.mxu0
    %v968 = vadd.f32 0.0, %v967
    %969 = vmatmul.f32.gmra.mxu0 %v902
    %v970 = vpop.f32.mrf.mxu0
    %v971 = vadd.f32 0.0, %v970
    %972 = vmatmul.f32.gmra.mxu0 %v905
    %v973 = vpop.f32.mrf.mxu0
    %v974 = vadd.f32 0.0, %v973
    %975 = vmatmul.f32.gmra.mxu0 %v908
    %v976 = vpop.f32.mrf.mxu0
    %v977 = vadd.f32 0.0, %v976
    %978 = vmatmul.f32.gmra.mxu0 %v911
    %v979 = vpop.f32.mrf.mxu0
    %v980 = vadd.f32 0.0, %v979
    %981 = vmatmul.f32.gmra.mxu0 %v914
    %v982 = vpop.f32.mrf.mxu0
    %v983 = vadd.f32 0.0, %v982
    %984 = vmatmul.f32.gmra.mxu0 %v917
    %v985 = vpop.f32.mrf.mxu0
    %v986 = vadd.f32 0.0, %v985
    %987 = vmatmul.f32.gmra.mxu0 %v920
    %v988 = vpop.f32.mrf.mxu0
    %v989 = vadd.f32 0.0, %v988
    %990 = vmatmul.f32.gmra.mxu0 %v923
    %v991 = vpop.f32.mrf.mxu0
    %v992 = vadd.f32 0.0, %v991
    %993 = vmatmul.f32.gmra.mxu0 %v926
    %v994 = vpop.f32.mrf.mxu0
    %v995 = vadd.f32 0.0, %v994
    %996 = vmatmul.f32.gmra.mxu0 %v929
    %v997 = vpop.f32.mrf.mxu0
    %v998 = vadd.f32 0.0, %v997
    %999 = vdwg.mxu0
    %v1000 = vld [vmem:[%s2] sm:$0x1]
    %v1002 = vperm.slane %v1000, 0
    %v1004 = vmul.f32 %v953, %v1002
    %v1005 = vmul.f32 %v956, %v1002
    %v1006 = vmul.f32 %v959, %v1002
    %v1007 = vmul.f32 %v962, %v1002
    %v1008 = vmul.f32 %v965, %v1002
    %v1009 = vmul.f32 %v968, %v1002
    %v1010 = vmul.f32 %v971, %v1002
    %v1011 = vmul.f32 %v974, %v1002
    %v1012 = vmul.f32 %v977, %v1002
    %v1013 = vmul.f32 %v980, %v1002
    %v1014 = vmul.f32 %v983, %v1002
    %v1015 = vmul.f32 %v986, %v1002
    %v1016 = vmul.f32 %v989, %v1002
    %v1017 = vmul.f32 %v992, %v1002
    %v1018 = vmul.f32 %v995, %v1002
    %v1019 = vmul.f32 %v998, %v1002
    %v1020 = vld [vmem:[%s3] sm:$0x1]
    %v1022 = vperm.slane %v1020, 0
    %v1024 = vadd.f32 %v1004, %v1022
    %v1025 = vadd.f32 %v1005, %v1022
    %v1026 = vadd.f32 %v1006, %v1022
    %v1027 = vadd.f32 %v1007, %v1022
    %v1028 = vadd.f32 %v1008, %v1022
    %v1029 = vadd.f32 %v1009, %v1022
    %v1030 = vadd.f32 %v1010, %v1022
    %v1031 = vadd.f32 %v1011, %v1022
    %v1032 = vadd.f32 %v1012, %v1022
    %v1033 = vadd.f32 %v1013, %v1022
    %v1034 = vadd.f32 %v1014, %v1022
    %v1035 = vadd.f32 %v1015, %v1022
    %v1036 = vadd.f32 %v1016, %v1022
    %v1037 = vadd.f32 %v1017, %v1022
    %v1038 = vadd.f32 %v1018, %v1022
    %v1039 = vadd.f32 %v1019, %v1022
    %v1040 = vmax.f32 %v1024, 0.0
    %v1041 = vmax.f32 %v1025, 0.0
    %v1042 = vmax.f32 %v1026, 0.0
    %v1043 = vmax.f32 %v1027, 0.0
    %v1044 = vmax.f32 %v1028, 0.0
    %v1045 = vmax.f32 %v1029, 0.0
    %v1046 = vmax.f32 %v1030, 0.0
    %v1047 = vmax.f32 %v1031, 0.0
    %v1048 = vmax.f32 %v1032, 0.0
    %v1049 = vmax.f32 %v1033, 0.0
    %v1050 = vmax.f32 %v1034, 0.0
    %v1051 = vmax.f32 %v1035, 0.0
    %v1052 = vmax.f32 %v1036, 0.0
    %v1053 = vmax.f32 %v1037, 0.0
    %v1054 = vmax.f32 %v1038, 0.0
    %v1055 = vmax.f32 %v1039, 0.0
    %v1072 = vrot.slane %v1040, 7
    %v1073 = vrot.slane %v1041, 7
    %v1074 = vrot.slane %v1042, 7
    %v1075 = vrot.slane %v1043, 7
    %v1076 = vrot.slane %v1044, 7
    %v1077 = vrot.slane %v1045, 7
    %v1078 = vrot.slane %v1046, 7
    %v1079 = vrot.slane %v1047, 7
    %v1080 = vrot.slane %v1048, 7
    %v1081 = vrot.slane %v1049, 7
    %v1082 = vrot.slane %v1050, 7
    %v1083 = vrot.slane %v1051, 7
    %v1084 = vrot.slane %v1052, 7
    %v1085 = vrot.slane %v1053, 7
    %v1086 = vrot.slane %v1054, 7
    %v1087 = vrot.slane %v1055, 7
    %v1104 = vsel %vm206, 0.0, %v1072
    %v1105 = vsel %vm206, 0.0, %v1073
    %v1106 = vsel %vm206, 0.0, %v1074
    %v1107 = vsel %vm206, 0.0, %v1075
    %v1108 = vsel %vm206, 0.0, %v1076
    %v1109 = vsel %vm206, 0.0, %v1077
    %v1110 = vsel %vm206, 0.0, %v1078
    %v1111 = vsel %vm206, 0.0, %v1079
    %v1112 = vsel %vm206, 0.0, %v1080
    %v1113 = vsel %vm206, 0.0, %v1081
    %v1114 = vsel %vm206, 0.0, %v1082
    %v1115 = vsel %vm206, 0.0, %v1083
    %v1116 = vsel %vm206, 0.0, %v1084
    %v1117 = vsel %vm206, 0.0, %v1085
    %v1118 = vsel %vm206, 0.0, %v1086
    %v1119 = vsel %vm206, 0.0, %v1087
    %v1120 = vsel %vm206, %v1072, 0.0
    %v1121 = vsel %vm206, %v1073, 0.0
    %v1122 = vsel %vm206, %v1074, 0.0
    %v1123 = vsel %vm206, %v1075, 0.0
    %v1124 = vsel %vm206, %v1076, 0.0
    %v1125 = vsel %vm206, %v1077, 0.0
    %v1126 = vsel %vm206, %v1078, 0.0
    %v1127 = vsel %vm206, %v1079, 0.0
    %v1128 = vsel %vm206, %v1080, 0.0
    %v1129 = vsel %vm206, %v1081, 0.0
    %v1130 = vsel %vm206, %v1082, 0.0
    %v1131 = vsel %vm206, %v1083, 0.0
    %v1132 = vsel %vm206, %v1084, 0.0
    %v1133 = vsel %vm206, %v1085, 0.0
    %v1134 = vsel %vm206, %v1086, 0.0
    %v1135 = vsel %vm206, %v1087, 0.0
    %v1164 = vrot.slane %v1104, 1
    %v1165 = vrot.slane %v1120, 1
    %v1166 = vsel %vm268, %v1164, %v1165
    %v1167 = vrot.slane %v1105, 1
    %v1168 = vrot.slane %v1121, 1
    %v1169 = vsel %vm268, %v1167, %v1168
    %v1170 = vrot.slane %v1106, 1
    %v1171 = vrot.slane %v1122, 1
    %v1172 = vsel %vm268, %v1170, %v1171
    %v1173 = vrot.slane %v1107, 1
    %v1174 = vrot.slane %v1123, 1
    %v1175 = vsel %vm268, %v1173, %v1174
    %v1176 = vrot.slane %v1108, 1
    %v1177 = vrot.slane %v1124, 1
    %v1178 = vsel %vm268, %v1176, %v1177
    %v1179 = vrot.slane %v1109, 1
    %v1180 = vrot.slane %v1125, 1
    %v1181 = vsel %vm268, %v1179, %v1180
    %v1182 = vrot.slane %v1110, 1
    %v1183 = vrot.slane %v1126, 1
    %v1184 = vsel %vm268, %v1182, %v1183
    %v1185 = vrot.slane %v1112, 1
    %v1186 = vrot.slane %v1128, 1
    %v1187 = vsel %vm268, %v1185, %v1186
    %v1188 = vrot.slane %v1113, 1
    %v1189 = vrot.slane %v1129, 1
    %v1190 = vsel %vm268, %v1188, %v1189
    %v1191 = vrot.slane %v1114, 1
    %v1192 = vrot.slane %v1130, 1
    %v1193 = vsel %vm268, %v1191, %v1192
    %v1194 = vrot.slane %v1115, 1
    %v1195 = vrot.slane %v1131, 1
    %v1196 = vsel %vm268, %v1194, %v1195
    %v1197 = vrot.slane %v1116, 1
    %v1198 = vrot.slane %v1132, 1
    %v1199 = vsel %vm268, %v1197, %v1198
    %v1200 = vrot.slane %v1117, 1
    %v1201 = vrot.slane %v1133, 1
    %v1202 = vsel %vm268, %v1200, %v1201
    %v1203 = vrot.slane %v1118, 1
    %v1204 = vrot.slane %v1134, 1
    %v1205 = vsel %vm268, %v1203, %v1204
    %v1221 = vrot.slane %v1104, 2
    %v1222 = vrot.slane %v1120, 2
    %v1223 = vsel %vm358, %v1221, %v1222
    %v1224 = vrot.slane %v1105, 2
    %v1225 = vrot.slane %v1121, 2
    %v1226 = vsel %vm358, %v1224, %v1225
    %v1227 = vrot.slane %v1106, 2
    %v1228 = vrot.slane %v1122, 2
    %v1229 = vsel %vm358, %v1227, %v1228
    %v1230 = vrot.slane %v1107, 2
    %v1231 = vrot.slane %v1123, 2
    %v1232 = vsel %vm358, %v1230, %v1231
    %v1233 = vrot.slane %v1108, 2
    %v1234 = vrot.slane %v1124, 2
    %v1235 = vsel %vm358, %v1233, %v1234
    %v1236 = vrot.slane %v1109, 2
    %v1237 = vrot.slane %v1125, 2
    %v1238 = vsel %vm358, %v1236, %v1237
    %v1239 = vrot.slane %v1110, 2
    %v1240 = vrot.slane %v1126, 2
    %v1241 = vsel %vm358, %v1239, %v1240
    %v1242 = vrot.slane %v1112, 2
    %v1243 = vrot.slane %v1128, 2
    %v1244 = vsel %vm358, %v1242, %v1243
    %v1245 = vrot.slane %v1113, 2
    %v1246 = vrot.slane %v1129, 2
    %v1247 = vsel %vm358, %v1245, %v1246
    %v1248 = vrot.slane %v1114, 2
    %v1249 = vrot.slane %v1130, 2
    %v1250 = vsel %vm358, %v1248, %v1249
    %v1251 = vrot.slane %v1115, 2
    %v1252 = vrot.slane %v1131, 2
    %v1253 = vsel %vm358, %v1251, %v1252
    %v1254 = vrot.slane %v1116, 2
    %v1255 = vrot.slane %v1132, 2
    %v1256 = vsel %vm358, %v1254, %v1255
    %v1257 = vrot.slane %v1117, 2
    %v1258 = vrot.slane %v1133, 2
    %v1259 = vsel %vm358, %v1257, %v1258
    %v1260 = vrot.slane %v1118, 2
    %v1261 = vrot.slane %v1134, 2
    %v1262 = vsel %vm358, %v1260, %v1261
    %v1282 = vrot.slane %v1111, 1
    %v1283 = vrot.slane %v1127, 1
    %v1284 = vsel %vm268, %v1282, %v1283
    %v1285 = vrot.slane %v1119, 1
    %v1286 = vrot.slane %v1135, 1
    %v1287 = vsel %vm268, %v1285, %v1286
    %v1290 = vrot.slane %v1111, 2
    %v1291 = vrot.slane %v1127, 2
    %v1292 = vsel %vm358, %v1290, %v1291
    %v1293 = vrot.slane %v1119, 2
    %v1294 = vrot.slane %v1135, 2
    %v1295 = vsel %vm358, %v1293, %v1294
    %v1298 = vld [vmem:[#allocation2] sm:$0xff]
    %v1299 = vld [vmem:[#allocation2 + $0x8] sm:$0xff]
    %v1300 = vld [vmem:[#allocation2 + $0x10] sm:$0xff]
    %v1301 = vld [vmem:[#allocation2 + $0x18] sm:$0xff]
    %v1302 = vld [vmem:[#allocation2 + $0x20] sm:$0xff]
    %v1303 = vld [vmem:[#allocation2 + $0x28] sm:$0xff]
    %v1304 = vld [vmem:[#allocation2 + $0x30] sm:$0xff]
    %v1305 = vld [vmem:[#allocation2 + $0x38] sm:$0xff]
    %v1306 = vld [vmem:[#allocation2 + $0x40] sm:$0xff]
    %v1307 = vld [vmem:[#allocation2 + $0x48] sm:$0xff]
    %v1308 = vld [vmem:[#allocation2 + $0x50] sm:$0xff]
    %v1309 = vld [vmem:[#allocation2 + $0x58] sm:$0xff]
    %v1310 = vld [vmem:[#allocation2 + $0x60] sm:$0xff]
    %v1311 = vld [vmem:[#allocation2 + $0x68] sm:$0xff]
    %v1312 = vld [vmem:[#allocation2 + $0x70] sm:$0xff]
    %v1313 = vld [vmem:[#allocation2 + $0x78] sm:$0xff]
    %v1314 = vld [vmem:[#allocation2 + $0x80] sm:$0xff]
    %v1315 = vld [vmem:[#allocation2 + $0x88] sm:$0xff]
    %v1316 = vld [vmem:[#allocation2 + $0x90] sm:$0xff]
    %v1317 = vld [vmem:[#allocation2 + $0x98] sm:$0xff]
    %v1318 = vld [vmem:[#allocation2 + $0xa0] sm:$0xff]
    %v1319 = vld [vmem:[#allocation2 + $0xa8] sm:$0xff]
    %v1320 = vld [vmem:[#allocation2 + $0xb0] sm:$0xff]
    %v1321 = vld [vmem:[#allocation2 + $0xb8] sm:$0xff]
    %v1322 = vld [vmem:[#allocation2 + $0xc0] sm:$0xff]
    %v1323 = vld [vmem:[#allocation2 + $0xc8] sm:$0xff]
    %v1324 = vld [vmem:[#allocation2 + $0xd0] sm:$0xff]
    %v1325 = vld [vmem:[#allocation2 + $0xd8] sm:$0xff]
    %v1326 = vld [vmem:[#allocation2 + $0xe0] sm:$0xff]
    %v1327 = vld [vmem:[#allocation2 + $0xe8] sm:$0xff]
    %v1328 = vld [vmem:[#allocation2 + $0xf0] sm:$0xff]
    %v1329 = vld [vmem:[#allocation2 + $0xf8] sm:$0xff]
    %v1330 = vld [vmem:[#allocation2 + $0x100] sm:$0xff]
    %v1331 = vld [vmem:[#allocation2 + $0x108] sm:$0xff]
    %v1332 = vld [vmem:[#allocation2 + $0x110] sm:$0xff]
    %v1333 = vld [vmem:[#allocation2 + $0x118] sm:$0xff]
    %v1334 = vld [vmem:[#allocation2 + $0x120] sm:$0xff]
    %v1335 = vld [vmem:[#allocation2 + $0x128] sm:$0xff]
    %v1336 = vld [vmem:[#allocation2 + $0x130] sm:$0xff]
    %v1337 = vld [vmem:[#allocation2 + $0x138] sm:$0xff]
    %v1338 = vld [vmem:[#allocation2 + $0x140] sm:$0xff]
    %v1339 = vld [vmem:[#allocation2 + $0x148] sm:$0xff]
    %v1340 = vld [vmem:[#allocation2 + $0x150] sm:$0xff]
    %v1341 = vld [vmem:[#allocation2 + $0x158] sm:$0xff]
    %v1342 = vld [vmem:[#allocation2 + $0x160] sm:$0xff]
    %v1343 = vld [vmem:[#allocation2 + $0x168] sm:$0xff]
    %v1344 = vld [vmem:[#allocation2 + $0x170] sm:$0xff]
    %v1345 = vld [vmem:[#allocation2 + $0x178] sm:$0xff]
    %v1346 = vld [vmem:[#allocation2 + $0x180] sm:$0xff]
    %v1347 = vld [vmem:[#allocation2 + $0x188] sm:$0xff]
    %v1348 = vld [vmem:[#allocation2 + $0x190] sm:$0xff]
    %v1349 = vld [vmem:[#allocation2 + $0x198] sm:$0xff]
    %v1350 = vld [vmem:[#allocation2 + $0x1a0] sm:$0xff]
    %v1351 = vld [vmem:[#allocation2 + $0x1a8] sm:$0xff]
    %v1352 = vld [vmem:[#allocation2 + $0x1b0] sm:$0xff]
    %v1353 = vld [vmem:[#allocation2 + $0x1b8] sm:$0xff]
    %v1354 = vld [vmem:[#allocation2 + $0x1c0] sm:$0xff]
    %v1355 = vld [vmem:[#allocation2 + $0x1c8] sm:$0xff]
    %v1356 = vld [vmem:[#allocation2 + $0x1d0] sm:$0xff]
    %v1357 = vld [vmem:[#allocation2 + $0x1d8] sm:$0xff]
    %v1358 = vld [vmem:[#allocation2 + $0x1e0] sm:$0xff]
    %v1359 = vld [vmem:[#allocation2 + $0x1e8] sm:$0xff]
    %v1360 = vld [vmem:[#allocation2 + $0x1f0] sm:$0xff]
    %v1361 = vld [vmem:[#allocation2 + $0x1f8] sm:$0xff]
    %v1362 = vld [vmem:[#allocation2 + $0x200] sm:$0xff]
    %v1363 = vld [vmem:[#allocation2 + $0x208] sm:$0xff]
    %v1364 = vld [vmem:[#allocation2 + $0x210] sm:$0xff]
    %v1365 = vld [vmem:[#allocation2 + $0x218] sm:$0xff]
    %v1366 = vld [vmem:[#allocation2 + $0x220] sm:$0xff]
    %v1367 = vld [vmem:[#allocation2 + $0x228] sm:$0xff]
    %v1368 = vld [vmem:[#allocation2 + $0x230] sm:$0xff]
    %v1369 = vld [vmem:[#allocation2 + $0x238] sm:$0xff]
    %v1370 = vld [vmem:[#allocation2 + $0x240] sm:$0xff]
    %v1371 = vld [vmem:[#allocation2 + $0x248] sm:$0xff]
    %v1372 = vld [vmem:[#allocation2 + $0x250] sm:$0xff]
    %v1373 = vld [vmem:[#allocation2 + $0x258] sm:$0xff]
    %v1374 = vld [vmem:[#allocation2 + $0x260] sm:$0xff]
    %v1375 = vld [vmem:[#allocation2 + $0x268] sm:$0xff]
    %v1376 = vld [vmem:[#allocation2 + $0x270] sm:$0xff]
    %v1377 = vld [vmem:[#allocation2 + $0x278] sm:$0xff]
    %v1378 = vld [vmem:[#allocation2 + $0x280] sm:$0xff]
    %v1379 = vld [vmem:[#allocation2 + $0x288] sm:$0xff]
    %v1380 = vld [vmem:[#allocation2 + $0x290] sm:$0xff]
    %v1381 = vld [vmem:[#allocation2 + $0x298] sm:$0xff]
    %v1382 = vld [vmem:[#allocation2 + $0x2a0] sm:$0xff]
    %v1383 = vld [vmem:[#allocation2 + $0x2a8] sm:$0xff]
    %v1384 = vld [vmem:[#allocation2 + $0x2b0] sm:$0xff]
    %v1385 = vld [vmem:[#allocation2 + $0x2b8] sm:$0xff]
    %v1386 = vld [vmem:[#allocation2 + $0x2c0] sm:$0xff]
    %v1387 = vld [vmem:[#allocation2 + $0x2c8] sm:$0xff]
    %v1388 = vld [vmem:[#allocation2 + $0x2d0] sm:$0xff]
    %v1389 = vld [vmem:[#allocation2 + $0x2d8] sm:$0xff]
    %v1390 = vld [vmem:[#allocation2 + $0x2e0] sm:$0xff]
    %v1391 = vld [vmem:[#allocation2 + $0x2e8] sm:$0xff]
    %v1392 = vld [vmem:[#allocation2 + $0x2f0] sm:$0xff]
    %v1393 = vld [vmem:[#allocation2 + $0x2f8] sm:$0xff]
    %v1394 = vld [vmem:[#allocation2 + $0x300] sm:$0xff]
    %v1395 = vld [vmem:[#allocation2 + $0x308] sm:$0xff]
    %v1396 = vld [vmem:[#allocation2 + $0x310] sm:$0xff]
    %v1397 = vld [vmem:[#allocation2 + $0x318] sm:$0xff]
    %v1398 = vld [vmem:[#allocation2 + $0x320] sm:$0xff]
    %v1399 = vld [vmem:[#allocation2 + $0x328] sm:$0xff]
    %v1400 = vld [vmem:[#allocation2 + $0x330] sm:$0xff]
    %v1401 = vld [vmem:[#allocation2 + $0x338] sm:$0xff]
    %v1402 = vld [vmem:[#allocation2 + $0x340] sm:$0xff]
    %v1403 = vld [vmem:[#allocation2 + $0x348] sm:$0xff]
    %v1404 = vld [vmem:[#allocation2 + $0x350] sm:$0xff]
    %v1405 = vld [vmem:[#allocation2 + $0x358] sm:$0xff]
    %v1406 = vld [vmem:[#allocation2 + $0x360] sm:$0xff]
    %v1407 = vld [vmem:[#allocation2 + $0x368] sm:$0xff]
    %v1408 = vld [vmem:[#allocation2 + $0x370] sm:$0xff]
    %v1409 = vld [vmem:[#allocation2 + $0x378] sm:$0xff]
    %v1410 = vld [vmem:[#allocation2 + $0x380] sm:$0xff]
    %v1411 = vld [vmem:[#allocation2 + $0x388] sm:$0xff]
    %v1412 = vld [vmem:[#allocation2 + $0x390] sm:$0xff]
    %v1413 = vld [vmem:[#allocation2 + $0x398] sm:$0xff]
    %v1414 = vld [vmem:[#allocation2 + $0x3a0] sm:$0xff]
    %v1415 = vld [vmem:[#allocation2 + $0x3a8] sm:$0xff]
    %v1416 = vld [vmem:[#allocation2 + $0x3b0] sm:$0xff]
    %v1417 = vld [vmem:[#allocation2 + $0x3b8] sm:$0xff]
    %v1418 = vld [vmem:[#allocation2 + $0x3c0] sm:$0xff]
    %v1419 = vld [vmem:[#allocation2 + $0x3c8] sm:$0xff]
    %v1420 = vld [vmem:[#allocation2 + $0x3d0] sm:$0xff]
    %v1421 = vld [vmem:[#allocation2 + $0x3d8] sm:$0xff]
    %v1422 = vld [vmem:[#allocation2 + $0x3e0] sm:$0xff]
    %v1423 = vld [vmem:[#allocation2 + $0x3e8] sm:$0xff]
    %v1424 = vld [vmem:[#allocation2 + $0x3f0] sm:$0xff]
    %v1425 = vld [vmem:[#allocation2 + $0x3f8] sm:$0xff]
    %v1426 = vld [vmem:[#allocation2 + $0x400] sm:$0xff]
    %v1427 = vld [vmem:[#allocation2 + $0x408] sm:$0xff]
    %v1428 = vld [vmem:[#allocation2 + $0x410] sm:$0xff]
    %v1429 = vld [vmem:[#allocation2 + $0x418] sm:$0xff]
    %v1430 = vld [vmem:[#allocation2 + $0x420] sm:$0xff]
    %v1431 = vld [vmem:[#allocation2 + $0x428] sm:$0xff]
    %v1432 = vld [vmem:[#allocation2 + $0x430] sm:$0xff]
    %v1433 = vld [vmem:[#allocation2 + $0x438] sm:$0xff]
    %v1434 = vld [vmem:[#allocation2 + $0x440] sm:$0xff]
    %v1435 = vld [vmem:[#allocation2 + $0x448] sm:$0xff]
    %v1436 = vld [vmem:[#allocation2 + $0x450] sm:$0xff]
    %v1437 = vld [vmem:[#allocation2 + $0x458] sm:$0xff]
    %v1438 = vld [vmem:[#allocation2 + $0x460] sm:$0xff]
    %v1439 = vld [vmem:[#allocation2 + $0x468] sm:$0xff]
    %v1440 = vld [vmem:[#allocation2 + $0x470] sm:$0xff]
    %v1441 = vld [vmem:[#allocation2 + $0x478] sm:$0xff]
    %1442 = vmatpush.msra.mxu0 %v1313
    %1443 = vmatpush.msra.mxu0 %v1312
    %1444 = vmatpush.msra.mxu0 %v1311
    %1445 = vmatpush.msra.mxu0 %v1310
    %1446 = vmatpush.msra.mxu0 %v1309
    %1447 = vmatpush.msra.mxu0 %v1308
    %1448 = vmatpush.msra.mxu0 %v1307
    %1449 = vmatpush.msra.mxu0 %v1306
    %1450 = vmatpush.msra.mxu0 %v1305
    %1451 = vmatpush.msra.mxu0 %v1304
    %1452 = vmatpush.msra.mxu0 %v1303
    %1453 = vmatpush.msra.mxu0 %v1302
    %1454 = vmatpush.msra.mxu0 %v1301
    %1455 = vmatpush.msra.mxu0 %v1300
    %1456 = vmatpush.msra.mxu0 %v1299
    %1457 = vmatpush.msra.mxu0 %v1298
    %1458 = vmatmul.f32.gmra.mxu0 0.0
    %v1459 = vpop.f32.mrf.mxu0
    %v1460 = vadd.f32 0.0, %v1459
    %1461 = vmatmul.f32.gmra.mxu0 %v1104
    %v1462 = vpop.f32.mrf.mxu0
    %v1463 = vadd.f32 0.0, %v1462
    %1464 = vmatmul.f32.gmra.mxu0 %v1105
    %v1465 = vpop.f32.mrf.mxu0
    %v1466 = vadd.f32 0.0, %v1465
    %1467 = vmatmul.f32.gmra.mxu0 %v1106
    %v1468 = vpop.f32.mrf.mxu0
    %v1469 = vadd.f32 0.0, %v1468
    %1470 = vmatmul.f32.gmra.mxu0 %v1107
    %v1471 = vpop.f32.mrf.mxu0
    %v1472 = vadd.f32 0.0, %v1471
    %1473 = vmatmul.f32.gmra.mxu0 %v1108
    %v1474 = vpop.f32.mrf.mxu0
    %v1475 = vadd.f32 0.0, %v1474
    %1476 = vmatmul.f32.gmra.mxu0 %v1109
    %v1477 = vpop.f32.mrf.mxu0
    %v1478 = vadd.f32 0.0, %v1477
    %1479 = vmatmul.f32.gmra.mxu0 %v1110
    %v1480 = vpop.f32.mrf.mxu0
    %v1481 = vadd.f32 0.0, %v1480
    %1482 = vmatmul.f32.gmra.mxu0 0.0
    %v1483 = vpop.f32.mrf.mxu0
    %v1484 = vadd.f32 0.0, %v1483
    %1485 = vmatmul.f32.gmra.mxu0 %v1112
    %v1486 = vpop.f32.mrf.mxu0
    %v1487 = vadd.f32 0.0, %v1486
    %1488 = vmatmul.f32.gmra.mxu0 %v1113
    %v1489 = vpop.f32.mrf.mxu0
    %v1490 = vadd.f32 0.0, %v1489
    %1491 = vmatmul.f32.gmra.mxu0 %v1114
    %v1492 = vpop.f32.mrf.mxu0
    %v1493 = vadd.f32 0.0, %v1492
    %1494 = vmatmul.f32.gmra.mxu0 %v1115
    %v1495 = vpop.f32.mrf.mxu0
    %v1496 = vadd.f32 0.0, %v1495
    %1497 = vmatmul.f32.gmra.mxu0 %v1116
    %v1498 = vpop.f32.mrf.mxu0
    %v1499 = vadd.f32 0.0, %v1498
    %1500 = vmatmul.f32.gmra.mxu0 %v1117
    %v1501 = vpop.f32.mrf.mxu0
    %v1502 = vadd.f32 0.0, %v1501
    %1503 = vmatmul.f32.gmra.mxu0 %v1118
    %v1504 = vpop.f32.mrf.mxu0
    %v1505 = vadd.f32 0.0, %v1504
    %1506 = vdwg.mxu0
    %1507 = vmatpush.msra.mxu0 %v1329
    %1508 = vmatpush.msra.mxu0 %v1328
    %1509 = vmatpush.msra.mxu0 %v1327
    %1510 = vmatpush.msra.mxu0 %v1326
    %1511 = vmatpush.msra.mxu0 %v1325
    %1512 = vmatpush.msra.mxu0 %v1324
    %1513 = vmatpush.msra.mxu0 %v1323
    %1514 = vmatpush.msra.mxu0 %v1322
    %1515 = vmatpush.msra.mxu0 %v1321
    %1516 = vmatpush.msra.mxu0 %v1320
    %1517 = vmatpush.msra.mxu0 %v1319
    %1518 = vmatpush.msra.mxu0 %v1318
    %1519 = vmatpush.msra.mxu0 %v1317
    %1520 = vmatpush.msra.mxu0 %v1316
    %1521 = vmatpush.msra.mxu0 %v1315
    %1522 = vmatpush.msra.mxu0 %v1314
    %1523 = vmatmul.f32.gmra.mxu0 %v270
    %v1524 = vpop.f32.mrf.mxu0
    %v1525 = vadd.f32 %v1460, %v1524
    %1526 = vmatmul.f32.gmra.mxu0 %v1166
    %v1527 = vpop.f32.mrf.mxu0
    %v1528 = vadd.f32 %v1463, %v1527
    %1529 = vmatmul.f32.gmra.mxu0 %v1169
    %v1530 = vpop.f32.mrf.mxu0
    %v1531 = vadd.f32 %v1466, %v1530
    %1532 = vmatmul.f32.gmra.mxu0 %v1172
    %v1533 = vpop.f32.mrf.mxu0
    %v1534 = vadd.f32 %v1469, %v1533
    %1535 = vmatmul.f32.gmra.mxu0 %v1175
    %v1536 = vpop.f32.mrf.mxu0
    %v1537 = vadd.f32 %v1472, %v1536
    %1538 = vmatmul.f32.gmra.mxu0 %v1178
    %v1539 = vpop.f32.mrf.mxu0
    %v1540 = vadd.f32 %v1475, %v1539
    %1541 = vmatmul.f32.gmra.mxu0 %v1181
    %v1542 = vpop.f32.mrf.mxu0
    %v1543 = vadd.f32 %v1478, %v1542
    %1544 = vmatmul.f32.gmra.mxu0 %v1184
    %v1545 = vpop.f32.mrf.mxu0
    %v1546 = vadd.f32 %v1481, %v1545
    %1547 = vmatmul.f32.gmra.mxu0 %v270
    %v1548 = vpop.f32.mrf.mxu0
    %v1549 = vadd.f32 %v1484, %v1548
    %1550 = vmatmul.f32.gmra.mxu0 %v1187
    %v1551 = vpop.f32.mrf.mxu0
    %v1552 = vadd.f32 %v1487, %v1551
    %1553 = vmatmul.f32.gmra.mxu0 %v1190
    %v1554 = vpop.f32.mrf.mxu0
    %v1555 = vadd.f32 %v1490, %v1554
    %1556 = vmatmul.f32.gmra.mxu0 %v1193
    %v1557 = vpop.f32.mrf.mxu0
    %v1558 = vadd.f32 %v1493, %v1557
    %1559 = vmatmul.f32.gmra.mxu0 %v1196
    %v1560 = vpop.f32.mrf.mxu0
    %v1561 = vadd.f32 %v1496, %v1560
    %1562 = vmatmul.f32.gmra.mxu0 %v1199
    %v1563 = vpop.f32.mrf.mxu0
    %v1564 = vadd.f32 %v1499, %v1563
    %1565 = vmatmul.f32.gmra.mxu0 %v1202
    %v1566 = vpop.f32.mrf.mxu0
    %v1567 = vadd.f32 %v1502, %v1566
    %1568 = vmatmul.f32.gmra.mxu0 %v1205
    %v1569 = vpop.f32.mrf.mxu0
    %v1570 = vadd.f32 %v1505, %v1569
    %1571 = vdwg.mxu0
    %1572 = vmatpush.msra.mxu0 %v1345
    %1573 = vmatpush.msra.mxu0 %v1344
    %1574 = vmatpush.msra.mxu0 %v1343
    %1575 = vmatpush.msra.mxu0 %v1342
    %1576 = vmatpush.msra.mxu0 %v1341
    %1577 = vmatpush.msra.mxu0 %v1340
    %1578 = vmatpush.msra.mxu0 %v1339
    %1579 = vmatpush.msra.mxu0 %v1338
    %1580 = vmatpush.msra.mxu0 %v1337
    %1581 = vmatpush.msra.mxu0 %v1336
    %1582 = vmatpush.msra.mxu0 %v1335
    %1583 = vmatpush.msra.mxu0 %v1334
    %1584 = vmatpush.msra.mxu0 %v1333
    %1585 = vmatpush.msra.mxu0 %v1332
    %1586 = vmatpush.msra.mxu0 %v1331
    %1587 = vmatpush.msra.mxu0 %v1330
    %1588 = vmatmul.f32.gmra.mxu0 %v360
    %v1589 = vpop.f32.mrf.mxu0
    %v1590 = vadd.f32 %v1525, %v1589
    %1591 = vmatmul.f32.gmra.mxu0 %v1223
    %v1592 = vpop.f32.mrf.mxu0
    %v1593 = vadd.f32 %v1528, %v1592
    %1594 = vmatmul.f32.gmra.mxu0 %v1226
    %v1595 = vpop.f32.mrf.mxu0
    %v1596 = vadd.f32 %v1531, %v1595
    %1597 = vmatmul.f32.gmra.mxu0 %v1229
    %v1598 = vpop.f32.mrf.mxu0
    %v1599 = vadd.f32 %v1534, %v1598
    %1600 = vmatmul.f32.gmra.mxu0 %v1232
    %v1601 = vpop.f32.mrf.mxu0
    %v1602 = vadd.f32 %v1537, %v1601
    %1603 = vmatmul.f32.gmra.mxu0 %v1235
    %v1604 = vpop.f32.mrf.mxu0
    %v1605 = vadd.f32 %v1540, %v1604
    %1606 = vmatmul.f32.gmra.mxu0 %v1238
    %v1607 = vpop.f32.mrf.mxu0
    %v1608 = vadd.f32 %v1543, %v1607
    %1609 = vmatmul.f32.gmra.mxu0 %v1241
    %v1610 = vpop.f32.mrf.mxu0
    %v1611 = vadd.f32 %v1546, %v1610
    %1612 = vmatmul.f32.gmra.mxu0 %v360
    %v1613 = vpop.f32.mrf.mxu0
    %v1614 = vadd.f32 %v1549, %v1613
    %1615 = vmatmul.f32.gmra.mxu0 %v1244
    %v1616 = vpop.f32.mrf.mxu0
    %v1617 = vadd.f32 %v1552, %v1616
    %1618 = vmatmul.f32.gmra.mxu0 %v1247
    %v1619 = vpop.f32.mrf.mxu0
    %v1620 = vadd.f32 %v1555, %v1619
    %1621 = vmatmul.f32.gmra.mxu0 %v1250
    %v1622 = vpop.f32.mrf.mxu0
    %v1623 = vadd.f32 %v1558, %v1622
    %1624 = vmatmul.f32.gmra.mxu0 %v1253
    %v1625 = vpop.f32.mrf.mxu0
    %v1626 = vadd.f32 %v1561, %v1625
    %1627 = vmatmul.f32.gmra.mxu0 %v1256
    %v1628 = vpop.f32.mrf.mxu0
    %v1629 = vadd.f32 %v1564, %v1628
    %1630 = vmatmul.f32.gmra.mxu0 %v1259
    %v1631 = vpop.f32.mrf.mxu0
    %v1632 = vadd.f32 %v1567, %v1631
    %1633 = vmatmul.f32.gmra.mxu0 %v1262
    %v1634 = vpop.f32.mrf.mxu0
    %v1635 = vadd.f32 %v1570, %v1634
    %1636 = vdwg.mxu0
    %1637 = vmatpush.msra.mxu0 %v1361
    %1638 = vmatpush.msra.mxu0 %v1360
    %1639 = vmatpush.msra.mxu0 %v1359
    %1640 = vmatpush.msra.mxu0 %v1358
    %1641 = vmatpush.msra.mxu0 %v1357
    %1642 = vmatpush.msra.mxu0 %v1356
    %1643 = vmatpush.msra.mxu0 %v1355
    %1644 = vmatpush.msra.mxu0 %v1354
    %1645 = vmatpush.msra.mxu0 %v1353
    %1646 = vmatpush.msra.mxu0 %v1352
    %1647 = vmatpush.msra.mxu0 %v1351
    %1648 = vmatpush.msra.mxu0 %v1350
    %1649 = vmatpush.msra.mxu0 %v1349
    %1650 = vmatpush.msra.mxu0 %v1348
    %1651 = vmatpush.msra.mxu0 %v1347
    %1652 = vmatpush.msra.mxu0 %v1346
    %1653 = vmatmul.f32.gmra.mxu0 %v1104
    %v1654 = vpop.f32.mrf.mxu0
    %v1655 = vadd.f32 %v1590, %v1654
    %1656 = vmatmul.f32.gmra.mxu0 %v1105
    %v1657 = vpop.f32.mrf.mxu0
    %v1658 = vadd.f32 %v1593, %v1657
    %1659 = vmatmul.f32.gmra.mxu0 %v1106
    %v1660 = vpop.f32.mrf.mxu0
    %v1661 = vadd.f32 %v1596, %v1660
    %1662 = vmatmul.f32.gmra.mxu0 %v1107
    %v1663 = vpop.f32.mrf.mxu0
    %v1664 = vadd.f32 %v1599, %v1663
    %1665 = vmatmul.f32.gmra.mxu0 %v1108
    %v1666 = vpop.f32.mrf.mxu0
    %v1667 = vadd.f32 %v1602, %v1666
    %1668 = vmatmul.f32.gmra.mxu0 %v1109
    %v1669 = vpop.f32.mrf.mxu0
    %v1670 = vadd.f32 %v1605, %v1669
    %1671 = vmatmul.f32.gmra.mxu0 %v1110
    %v1672 = vpop.f32.mrf.mxu0
    %v1673 = vadd.f32 %v1608, %v1672
    %1674 = vmatmul.f32.gmra.mxu0 %v1111
    %v1675 = vpop.f32.mrf.mxu0
    %v1676 = vadd.f32 %v1611, %v1675
    %1677 = vmatmul.f32.gmra.mxu0 %v1112
    %v1678 = vpop.f32.mrf.mxu0
    %v1679 = vadd.f32 %v1614, %v1678
    %1680 = vmatmul.f32.gmra.mxu0 %v1113
    %v1681 = vpop.f32.mrf.mxu0
    %v1682 = vadd.f32 %v1617, %v1681
    %1683 = vmatmul.f32.gmra.mxu0 %v1114
    %v1684 = vpop.f32.mrf.mxu0
    %v1685 = vadd.f32 %v1620, %v1684
    %1686 = vmatmul.f32.gmra.mxu0 %v1115
    %v1687 = vpop.f32.mrf.mxu0
    %v1688 = vadd.f32 %v1623, %v1687
    %1689 = vmatmul.f32.gmra.mxu0 %v1116
    %v1690 = vpop.f32.mrf.mxu0
    %v1691 = vadd.f32 %v1626, %v1690
    %1692 = vmatmul.f32.gmra.mxu0 %v1117
    %v1693 = vpop.f32.mrf.mxu0
    %v1694 = vadd.f32 %v1629, %v1693
    %1695 = vmatmul.f32.gmra.mxu0 %v1118
    %v1696 = vpop.f32.mrf.mxu0
    %v1697 = vadd.f32 %v1632, %v1696
    %1698 = vmatmul.f32.gmra.mxu0 %v1119
    %v1699 = vpop.f32.mrf.mxu0
    %v1700 = vadd.f32 %v1635, %v1699
    %1701 = vdwg.mxu0
    %1702 = vmatpush.msra.mxu0 %v1377
    %1703 = vmatpush.msra.mxu0 %v1376
    %1704 = vmatpush.msra.mxu0 %v1375
    %1705 = vmatpush.msra.mxu0 %v1374
    %1706 = vmatpush.msra.mxu0 %v1373
    %1707 = vmatpush.msra.mxu0 %v1372
    %1708 = vmatpush.msra.mxu0 %v1371
    %1709 = vmatpush.msra.mxu0 %v1370
    %1710 = vmatpush.msra.mxu0 %v1369
    %1711 = vmatpush.msra.mxu0 %v1368
    %1712 = vmatpush.msra.mxu0 %v1367
    %1713 = vmatpush.msra.mxu0 %v1366
    %1714 = vmatpush.msra.mxu0 %v1365
    %1715 = vmatpush.msra.mxu0 %v1364
    %1716 = vmatpush.msra.mxu0 %v1363
    %1717 = vmatpush.msra.mxu0 %v1362
    %1718 = vmatmul.f32.gmra.mxu0 %v1166
    %v1719 = vpop.f32.mrf.mxu0
    %v1720 = vadd.f32 %v1655, %v1719
    %1721 = vmatmul.f32.gmra.mxu0 %v1169
    %v1722 = vpop.f32.mrf.mxu0
    %v1723 = vadd.f32 %v1658, %v1722
    %1724 = vmatmul.f32.gmra.mxu0 %v1172
    %v1725 = vpop.f32.mrf.mxu0
    %v1726 = vadd.f32 %v1661, %v1725
    %1727 = vmatmul.f32.gmra.mxu0 %v1175
    %v1728 = vpop.f32.mrf.mxu0
    %v1729 = vadd.f32 %v1664, %v1728
    %1730 = vmatmul.f32.gmra.mxu0 %v1178
    %v1731 = vpop.f32.mrf.mxu0
    %v1732 = vadd.f32 %v1667, %v1731
    %1733 = vmatmul.f32.gmra.mxu0 %v1181
    %v1734 = vpop.f32.mrf.mxu0
    %v1735 = vadd.f32 %v1670, %v1734
    %1736 = vmatmul.f32.gmra.mxu0 %v1184
    %v1737 = vpop.f32.mrf.mxu0
    %v1738 = vadd.f32 %v1673, %v1737
    %1739 = vmatmul.f32.gmra.mxu0 %v1284
    %v1740 = vpop.f32.mrf.mxu0
    %v1741 = vadd.f32 %v1676, %v1740
    %1742 = vmatmul.f32.gmra.mxu0 %v1187
    %v1743 = vpop.f32.mrf.mxu0
    %v1744 = vadd.f32 %v1679, %v1743
    %1745 = vmatmul.f32.gmra.mxu0 %v1190
    %v1746 = vpop.f32.mrf.mxu0
    %v1747 = vadd.f32 %v1682, %v1746
    %1748 = vmatmul.f32.gmra.mxu0 %v1193
    %v1749 = vpop.f32.mrf.mxu0
    %v1750 = vadd.f32 %v1685, %v1749
    %1751 = vmatmul.f32.gmra.mxu0 %v1196
    %v1752 = vpop.f32.mrf.mxu0
    %v1753 = vadd.f32 %v1688, %v1752
    %1754 = vmatmul.f32.gmra.mxu0 %v1199
    %v1755 = vpop.f32.mrf.mxu0
    %v1756 = vadd.f32 %v1691, %v1755
    %1757 = vmatmul.f32.gmra.mxu0 %v1202
    %v1758 = vpop.f32.mrf.mxu0
    %v1759 = vadd.f32 %v1694, %v1758
    %1760 = vmatmul.f32.gmra.mxu0 %v1205
    %v1761 = vpop.f32.mrf.mxu0
    %v1762 = vadd.f32 %v1697, %v1761
    %1763 = vmatmul.f32.gmra.mxu0 %v1287
    %v1764 = vpop.f32.mrf.mxu0
    %v1765 = vadd.f32 %v1700, %v1764
    %1766 = vdwg.mxu0
    %1767 = vmatpush.msra.mxu0 %v1393
    %1768 = vmatpush.msra.mxu0 %v1392
    %1769 = vmatpush.msra.mxu0 %v1391
    %1770 = vmatpush.msra.mxu0 %v1390
    %1771 = vmatpush.msra.mxu0 %v1389
    %1772 = vmatpush.msra.mxu0 %v1388
    %1773 = vmatpush.msra.mxu0 %v1387
    %1774 = vmatpush.msra.mxu0 %v1386
    %1775 = vmatpush.msra.mxu0 %v1385
    %1776 = vmatpush.msra.mxu0 %v1384
    %1777 = vmatpush.msra.mxu0 %v1383
    %1778 = vmatpush.msra.mxu0 %v1382
    %1779 = vmatpush.msra.mxu0 %v1381
    %1780 = vmatpush.msra.mxu0 %v1380
    %1781 = vmatpush.msra.mxu0 %v1379
    %1782 = vmatpush.msra.mxu0 %v1378
    %1783 = vmatmul.f32.gmra.mxu0 %v1223
    %v1784 = vpop.f32.mrf.mxu0
    %v1785 = vadd.f32 %v1720, %v1784
    %1786 = vmatmul.f32.gmra.mxu0 %v1226
    %v1787 = vpop.f32.mrf.mxu0
    %v1788 = vadd.f32 %v1723, %v1787
    %1789 = vmatmul.f32.gmra.mxu0 %v1229
    %v1790 = vpop.f32.mrf.mxu0
    %v1791 = vadd.f32 %v1726, %v1790
    %1792 = vmatmul.f32.gmra.mxu0 %v1232
    %v1793 = vpop.f32.mrf.mxu0
    %v1794 = vadd.f32 %v1729, %v1793
    %1795 = vmatmul.f32.gmra.mxu0 %v1235
    %v1796 = vpop.f32.mrf.mxu0
    %v1797 = vadd.f32 %v1732, %v1796
    %1798 = vmatmul.f32.gmra.mxu0 %v1238
    %v1799 = vpop.f32.mrf.mxu0
    %v1800 = vadd.f32 %v1735, %v1799
    %1801 = vmatmul.f32.gmra.mxu0 %v1241
    %v1802 = vpop.f32.mrf.mxu0
    %v1803 = vadd.f32 %v1738, %v1802
    %1804 = vmatmul.f32.gmra.mxu0 %v1292
    %v1805 = vpop.f32.mrf.mxu0
    %v1806 = vadd.f32 %v1741, %v1805
    %1807 = vmatmul.f32.gmra.mxu0 %v1244
    %v1808 = vpop.f32.mrf.mxu0
    %v1809 = vadd.f32 %v1744, %v1808
    %1810 = vmatmul.f32.gmra.mxu0 %v1247
    %v1811 = vpop.f32.mrf.mxu0
    %v1812 = vadd.f32 %v1747, %v1811
    %1813 = vmatmul.f32.gmra.mxu0 %v1250
    %v1814 = vpop.f32.mrf.mxu0
    %v1815 = vadd.f32 %v1750, %v1814
    %1816 = vmatmul.f32.gmra.mxu0 %v1253
    %v1817 = vpop.f32.mrf.mxu0
    %v1818 = vadd.f32 %v1753, %v1817
    %1819 = vmatmul.f32.gmra.mxu0 %v1256
    %v1820 = vpop.f32.mrf.mxu0
    %v1821 = vadd.f32 %v1756, %v1820
    %1822 = vmatmul.f32.gmra.mxu0 %v1259
    %v1823 = vpop.f32.mrf.mxu0
    %v1824 = vadd.f32 %v1759, %v1823
    %1825 = vmatmul.f32.gmra.mxu0 %v1262
    %v1826 = vpop.f32.mrf.mxu0
    %v1827 = vadd.f32 %v1762, %v1826
    %1828 = vmatmul.f32.gmra.mxu0 %v1295
    %v1829 = vpop.f32.mrf.mxu0
    %v1830 = vadd.f32 %v1765, %v1829
    %1831 = vdwg.mxu0
    %1832 = vmatpush.msra.mxu0 %v1409
    %1833 = vmatpush.msra.mxu0 %v1408
    %1834 = vmatpush.msra.mxu0 %v1407
    %1835 = vmatpush.msra.mxu0 %v1406
    %1836 = vmatpush.msra.mxu0 %v1405
    %1837 = vmatpush.msra.mxu0 %v1404
    %1838 = vmatpush.msra.mxu0 %v1403
    %1839 = vmatpush.msra.mxu0 %v1402
    %1840 = vmatpush.msra.mxu0 %v1401
    %1841 = vmatpush.msra.mxu0 %v1400
    %1842 = vmatpush.msra.mxu0 %v1399
    %1843 = vmatpush.msra.mxu0 %v1398
    %1844 = vmatpush.msra.mxu0 %v1397
    %1845 = vmatpush.msra.mxu0 %v1396
    %1846 = vmatpush.msra.mxu0 %v1395
    %1847 = vmatpush.msra.mxu0 %v1394
    %1848 = vmatmul.f32.gmra.mxu0 %v1105
    %v1849 = vpop.f32.mrf.mxu0
    %v1850 = vadd.f32 %v1785, %v1849
    %1851 = vmatmul.f32.gmra.mxu0 %v1106
    %v1852 = vpop.f32.mrf.mxu0
    %v1853 = vadd.f32 %v1788, %v1852
    %1854 = vmatmul.f32.gmra.mxu0 %v1107
    %v1855 = vpop.f32.mrf.mxu0
    %v1856 = vadd.f32 %v1791, %v1855
    %1857 = vmatmul.f32.gmra.mxu0 %v1108
    %v1858 = vpop.f32.mrf.mxu0
    %v1859 = vadd.f32 %v1794, %v1858
    %1860 = vmatmul.f32.gmra.mxu0 %v1109
    %v1861 = vpop.f32.mrf.mxu0
    %v1862 = vadd.f32 %v1797, %v1861
    %1863 = vmatmul.f32.gmra.mxu0 %v1110
    %v1864 = vpop.f32.mrf.mxu0
    %v1865 = vadd.f32 %v1800, %v1864
    %1866 = vmatmul.f32.gmra.mxu0 %v1111
    %v1867 = vpop.f32.mrf.mxu0
    %v1868 = vadd.f32 %v1803, %v1867
    %1869 = vmatmul.f32.gmra.mxu0 0.0
    %v1870 = vpop.f32.mrf.mxu0
    %v1871 = vadd.f32 %v1806, %v1870
    %1872 = vmatmul.f32.gmra.mxu0 %v1113
    %v1873 = vpop.f32.mrf.mxu0
    %v1874 = vadd.f32 %v1809, %v1873
    %1875 = vmatmul.f32.gmra.mxu0 %v1114
    %v1876 = vpop.f32.mrf.mxu0
    %v1877 = vadd.f32 %v1812, %v1876
    %1878 = vmatmul.f32.gmra.mxu0 %v1115
    %v1879 = vpop.f32.mrf.mxu0
    %v1880 = vadd.f32 %v1815, %v1879
    %1881 = vmatmul.f32.gmra.mxu0 %v1116
    %v1882 = vpop.f32.mrf.mxu0
    %v1883 = vadd.f32 %v1818, %v1882
    %1884 = vmatmul.f32.gmra.mxu0 %v1117
    %v1885 = vpop.f32.mrf.mxu0
    %v1886 = vadd.f32 %v1821, %v1885
    %1887 = vmatmul.f32.gmra.mxu0 %v1118
    %v1888 = vpop.f32.mrf.mxu0
    %v1889 = vadd.f32 %v1824, %v1888
    %1890 = vmatmul.f32.gmra.mxu0 %v1119
    %v1891 = vpop.f32.mrf.mxu0
    %v1892 = vadd.f32 %v1827, %v1891
    %1893 = vmatmul.f32.gmra.mxu0 0.0
    %v1894 = vpop.f32.mrf.mxu0
    %v1895 = vadd.f32 %v1830, %v1894
    %1896 = vdwg.mxu0
    %1897 = vmatpush.msra.mxu0 %v1425
    %1898 = vmatpush.msra.mxu0 %v1424
    %1899 = vmatpush.msra.mxu0 %v1423
    %1900 = vmatpush.msra.mxu0 %v1422
    %1901 = vmatpush.msra.mxu0 %v1421
    %1902 = vmatpush.msra.mxu0 %v1420
    %1903 = vmatpush.msra.mxu0 %v1419
    %1904 = vmatpush.msra.mxu0 %v1418
    %1905 = vmatpush.msra.mxu0 %v1417
    %1906 = vmatpush.msra.mxu0 %v1416
    %1907 = vmatpush.msra.mxu0 %v1415
    %1908 = vmatpush.msra.mxu0 %v1414
    %1909 = vmatpush.msra.mxu0 %v1413
    %1910 = vmatpush.msra.mxu0 %v1412
    %1911 = vmatpush.msra.mxu0 %v1411
    %1912 = vmatpush.msra.mxu0 %v1410
    %1913 = vmatmul.f32.gmra.mxu0 %v1169
    %v1914 = vpop.f32.mrf.mxu0
    %v1915 = vadd.f32 %v1850, %v1914
    %1916 = vmatmul.f32.gmra.mxu0 %v1172
    %v1917 = vpop.f32.mrf.mxu0
    %v1918 = vadd.f32 %v1853, %v1917
    %1919 = vmatmul.f32.gmra.mxu0 %v1175
    %v1920 = vpop.f32.mrf.mxu0
    %v1921 = vadd.f32 %v1856, %v1920
    %1922 = vmatmul.f32.gmra.mxu0 %v1178
    %v1923 = vpop.f32.mrf.mxu0
    %v1924 = vadd.f32 %v1859, %v1923
    %1925 = vmatmul.f32.gmra.mxu0 %v1181
    %v1926 = vpop.f32.mrf.mxu0
    %v1927 = vadd.f32 %v1862, %v1926
    %1928 = vmatmul.f32.gmra.mxu0 %v1184
    %v1929 = vpop.f32.mrf.mxu0
    %v1930 = vadd.f32 %v1865, %v1929
    %1931 = vmatmul.f32.gmra.mxu0 %v1284
    %v1932 = vpop.f32.mrf.mxu0
    %v1933 = vadd.f32 %v1868, %v1932
    %1934 = vmatmul.f32.gmra.mxu0 %v270
    %v1935 = vpop.f32.mrf.mxu0
    %v1936 = vadd.f32 %v1871, %v1935
    %1937 = vmatmul.f32.gmra.mxu0 %v1190
    %v1938 = vpop.f32.mrf.mxu0
    %v1939 = vadd.f32 %v1874, %v1938
    %1940 = vmatmul.f32.gmra.mxu0 %v1193
    %v1941 = vpop.f32.mrf.mxu0
    %v1942 = vadd.f32 %v1877, %v1941
    %1943 = vmatmul.f32.gmra.mxu0 %v1196
    %v1944 = vpop.f32.mrf.mxu0
    %v1945 = vadd.f32 %v1880, %v1944
    %1946 = vmatmul.f32.gmra.mxu0 %v1199
    %v1947 = vpop.f32.mrf.mxu0
    %v1948 = vadd.f32 %v1883, %v1947
    %1949 = vmatmul.f32.gmra.mxu0 %v1202
    %v1950 = vpop.f32.mrf.mxu0
    %v1951 = vadd.f32 %v1886, %v1950
    %1952 = vmatmul.f32.gmra.mxu0 %v1205
    %v1953 = vpop.f32.mrf.mxu0
    %v1954 = vadd.f32 %v1889, %v1953
    %1955 = vmatmul.f32.gmra.mxu0 %v1287
    %v1956 = vpop.f32.mrf.mxu0
    %v1957 = vadd.f32 %v1892, %v1956
    %1958 = vmatmul.f32.gmra.mxu0 %v270
    %v1959 = vpop.f32.mrf.mxu0
    %v1960 = vadd.f32 %v1895, %v1959
    %1961 = vdwg.mxu0
    %1962 = vmatpush.msra.mxu0 %v1441
    %1963 = vmatpush.msra.mxu0 %v1440
    %1964 = vmatpush.msra.mxu0 %v1439
    %1965 = vmatpush.msra.mxu0 %v1438
    %1966 = vmatpush.msra.mxu0 %v1437
    %1967 = vmatpush.msra.mxu0 %v1436
    %1968 = vmatpush.msra.mxu0 %v1435
    %1969 = vmatpush.msra.mxu0 %v1434
    %1970 = vmatpush.msra.mxu0 %v1433
    %1971 = vmatpush.msra.mxu0 %v1432
    %1972 = vmatpush.msra.mxu0 %v1431
    %1973 = vmatpush.msra.mxu0 %v1430
    %1974 = vmatpush.msra.mxu0 %v1429
    %1975 = vmatpush.msra.mxu0 %v1428
    %1976 = vmatpush.msra.mxu0 %v1427
    %1977 = vmatpush.msra.mxu0 %v1426
    %1978 = vmatmul.f32.gmra.mxu0 %v1226
    %v1979 = vpop.f32.mrf.mxu0
    %v1980 = vadd.f32 %v1915, %v1979
    %1981 = vmatmul.f32.gmra.mxu0 %v1229
    %v1982 = vpop.f32.mrf.mxu0
    %v1983 = vadd.f32 %v1918, %v1982
    %1984 = vmatmul.f32.gmra.mxu0 %v1232
    %v1985 = vpop.f32.mrf.mxu0
    %v1986 = vadd.f32 %v1921, %v1985
    %1987 = vmatmul.f32.gmra.mxu0 %v1235
    %v1988 = vpop.f32.mrf.mxu0
    %v1989 = vadd.f32 %v1924, %v1988
    %1990 = vmatmul.f32.gmra.mxu0 %v1238
    %v1991 = vpop.f32.mrf.mxu0
    %v1992 = vadd.f32 %v1927, %v1991
    %1993 = vmatmul.f32.gmra.mxu0 %v1241
    %v1994 = vpop.f32.mrf.mxu0
    %v1995 = vadd.f32 %v1930, %v1994
    %1996 = vmatmul.f32.gmra.mxu0 %v1292
    %v1997 = vpop.f32.mrf.mxu0
    %v1998 = vadd.f32 %v1933, %v1997
    %1999 = vmatmul.f32.gmra.mxu0 %v360
    %v2000 = vpop.f32.mrf.mxu0
    %v2001 = vadd.f32 %v1936, %v2000
    %2002 = vmatmul.f32.gmra.mxu0 %v1247
    %v2003 = vpop.f32.mrf.mxu0
    %v2004 = vadd.f32 %v1939, %v2003
    %2005 = vmatmul.f32.gmra.mxu0 %v1250
    %v2006 = vpop.f32.mrf.mxu0
    %v2007 = vadd.f32 %v1942, %v2006
    %2008 = vmatmul.f32.gmra.mxu0 %v1253
    %v2009 = vpop.f32.mrf.mxu0
    %v2010 = vadd.f32 %v1945, %v2009
    %2011 = vmatmul.f32.gmra.mxu0 %v1256
    %v2012 = vpop.f32.mrf.mxu0
    %v2013 = vadd.f32 %v1948, %v2012
    %2014 = vmatmul.f32.gmra.mxu0 %v1259
    %v2015 = vpop.f32.mrf.mxu0
    %v2016 = vadd.f32 %v1951, %v2015
    %2017 = vmatmul.f32.gmra.mxu0 %v1262
    %v2018 = vpop.f32.mrf.mxu0
    %v2019 = vadd.f32 %v1954, %v2018
    %2020 = vmatmul.f32.gmra.mxu0 %v1295
    %v2021 = vpop.f32.mrf.mxu0
    %v2022 = vadd.f32 %v1957, %v2021
    %2023 = vmatmul.f32.gmra.mxu0 %v360
    %v2024 = vpop.f32.mrf.mxu0
    %v2025 = vadd.f32 %v1960, %v2024
    %2026 = vdwg.mxu0
    %v2027 = vld [vmem:[%s5] sm:$0x1]
    %v2029 = vperm.slane %v2027, 0
    %v2031 = vmul.f32 %v1980, %v2029
    %v2032 = vmul.f32 %v1983, %v2029
    %v2033 = vmul.f32 %v1986, %v2029
    %v2034 = vmul.f32 %v1989, %v2029
    %v2035 = vmul.f32 %v1992, %v2029
    %v2036 = vmul.f32 %v1995, %v2029
    %v2037 = vmul.f32 %v1998, %v2029
    %v2038 = vmul.f32 %v2001, %v2029
    %v2039 = vmul.f32 %v2004, %v2029
    %v2040 = vmul.f32 %v2007, %v2029
    %v2041 = vmul.f32 %v2010, %v2029
    %v2042 = vmul.f32 %v2013, %v2029
    %v2043 = vmul.f32 %v2016, %v2029
    %v2044 = vmul.f32 %v2019, %v2029
    %v2045 = vmul.f32 %v2022, %v2029
    %v2046 = vmul.f32 %v2025, %v2029
    %v2047 = vld [vmem:[%s6] sm:$0x1]
    %v2049 = vperm.slane %v2047, 0
    %v2051 = vadd.f32 %v2031, %v2049
    %v2052 = vadd.f32 %v2032, %v2049
    %v2053 = vadd.f32 %v2033, %v2049
    %v2054 = vadd.f32 %v2034, %v2049
    %v2055 = vadd.f32 %v2035, %v2049
    %v2056 = vadd.f32 %v2036, %v2049
    %v2057 = vadd.f32 %v2037, %v2049
    %v2058 = vadd.f32 %v2038, %v2049
    %v2059 = vadd.f32 %v2039, %v2049
    %v2060 = vadd.f32 %v2040, %v2049
    %v2061 = vadd.f32 %v2041, %v2049
    %v2062 = vadd.f32 %v2042, %v2049
    %v2063 = vadd.f32 %v2043, %v2049
    %v2064 = vadd.f32 %v2044, %v2049
    %v2065 = vadd.f32 %v2045, %v2049
    %v2066 = vadd.f32 %v2046, %v2049
    %v2067 = vmax.f32 %v2051, 0.0
    %v2068 = vmax.f32 %v2052, 0.0
    %v2069 = vmax.f32 %v2053, 0.0
    %v2070 = vmax.f32 %v2054, 0.0
    %v2071 = vmax.f32 %v2055, 0.0
    %v2072 = vmax.f32 %v2056, 0.0
    %v2073 = vmax.f32 %v2057, 0.0
    %v2074 = vmax.f32 %v2058, 0.0
    %v2075 = vmax.f32 %v2059, 0.0
    %v2076 = vmax.f32 %v2060, 0.0
    %v2077 = vmax.f32 %v2061, 0.0
    %v2078 = vmax.f32 %v2062, 0.0
    %v2079 = vmax.f32 %v2063, 0.0
    %v2080 = vmax.f32 %v2064, 0.0
    %v2081 = vmax.f32 %v2065, 0.0
    %v2082 = vmax.f32 %v2066, 0.0
    %2083 = vst [vmem:[#allocation5] sm:$0xff] %v2067
    %2084 = vst [vmem:[#allocation5 + $0x8] sm:$0xff] %v2068
    %2085 = vst [vmem:[#allocation5 + $0x10] sm:$0xff] %v2069
    %2086 = vst [vmem:[#allocation5 + $0x18] sm:$0xff] %v2070
    %2087 = vst [vmem:[#allocation5 + $0x20] sm:$0xff] %v2071
    %2088 = vst [vmem:[#allocation5 + $0x28] sm:$0xff] %v2072
    %2089 = vst [vmem:[#allocation5 + $0x30] sm:$0xff] %v2073
    %2090 = vst [vmem:[#allocation5 + $0x38] sm:$0xff] %v2074
    %2091 = vst [vmem:[#allocation5 + $0x40] sm:$0xff] %v2075
    %2092 = vst [vmem:[#allocation5 + $0x48] sm:$0xff] %v2076
    %2093 = vst [vmem:[#allocation5 + $0x50] sm:$0xff] %v2077
    %2094 = vst [vmem:[#allocation5 + $0x58] sm:$0xff] %v2078
    %2095 = vst [vmem:[#allocation5 + $0x60] sm:$0xff] %v2079
    %2096 = vst [vmem:[#allocation5 + $0x68] sm:$0xff] %v2080
    %2097 = vst [vmem:[#allocation5 + $0x70] sm:$0xff] %v2081
    %2098 = vst [vmem:[#allocation5 + $0x78] sm:$0xff] %v2082
    // Predicated region
    $region34: #{tpu_custom_call.1} parent=1 // pred_check
      _
    $region35: #{tpu_custom_call.1} parent=1 // pred_check_branch
      %2100 = sbr.rel (0) target = $region37
    $region36: #{tpu_custom_call.1} parent=1 // pred_region
      %2102 = vsyncadd [#allocation4], 0
      %s2103 = sshll.u32 [#allocation5], 4
      %s2104 = int_to_ptr.vmem [resolvable:$true] %s2103
      %s2105 = sshll.u32 %s7, 4
      %s2106 = int_to_ptr.hbm [resolvable:$true] %s2105
      %2111 = dma.vmem_to_hbm [thread:$0]  %s2104, 2048, %s2106, [#allocation4], 128, 128, 8
    $region37: #{tpu_custom_call.1} parent=1 // pred_fallthru
      _
    // Predicated region
    $region38: #{tpu_custom_call.1} parent=1 // pred_check
      _
    $region39: #{tpu_custom_call.1} parent=1 // pred_check_branch
      %2113 = sbr.rel (0) target = $region41
    $region40: #{tpu_custom_call.1} parent=1 // pred_region
      %2115 = dma.done [#allocation4], 2048
    $region41: #{tpu_custom_call.1} parent=1 // pred_fallthru
      _
    %2116 = vsyncpa [#allocation3], 1
    %2117 = vsyncpa [#allocation4], 1

</llo_original>
